<compile_context>
chip_gen: v5e
topology: v5e:2x2
jax: 0.10.0
libtpu: 0.0.40
codegen_flags: <defaults>
</compile_context>

<pallas_src>
import functools

import jax
import jax.numpy as jnp
from jax.experimental import pallas as pl
from jax.experimental.pallas import tpu as pltpu

HIDDEN = 128
N_MFCC = 40
NUM_CLASSES = 26
C_PAD = 128          # lane-dense padded fc-output width (sliced back to 26)


def spelling_rnn_kernel(x_ref,        # (T*B, I)    bf16, time-major rows
                        wih_f_ref,    # (I, 4H)     bf16, gate cols [i|f|o|g]
                        whh_f_ref,    # (H, 4H)     bf16
                        b_f_ref,      # (1, 4H)     f32  (b_ih + b_hh)
                        wih_b_ref,    # (I, 4H)     bf16, reverse direction
                        b_b_ref,      # (1, 4H)     f32
                        wfc_ref,      # (2H, C_PAD) bf16
                        bfc_ref,      # (1, C_PAD)  f32
                        out_ref,      # (B, C_PAD)  f32
                        *, T, B, H):

    def apply_gates(gates, c_prev):
        # gate column layout: [ i | f | o | g ]  -> one sigmoid slab + one tanh
        sig = jax.nn.sigmoid(gates[:, 0:3 * H])
        i = sig[:, 0 * H:1 * H]
        f = sig[:, 1 * H:2 * H]
        o = sig[:, 2 * H:3 * H]
        g = jnp.tanh(gates[:, 3 * H:4 * H])
        c_new = f * c_prev + i * g
        h_new = o * jnp.tanh(c_new)
        return h_new, c_new

    x = x_ref[...]                                             # (T*B, I) bf16
    zeros_bh = jnp.zeros((B, H), jnp.float32)

    # ---- Backward direction: single cell step on x[:, T-1, :] from zero state.
    # PyTorch's reverse pass visits t = T-1 first, so out[:, -1, H:] is exactly
    # this; h0 == 0 makes the h @ W_hh_b term identically zero (skipped).
    # Placed before the serial forward loop so its MXU/EUP work fills the
    # pipeline head.
    gates_b = (jnp.dot(x[(T - 1) * B:, :], wih_b_ref[...],
                       preferred_element_type=jnp.float32) + b_b_ref[...])
    h_bwd, _ = apply_gates(gates_b, zeros_bh)

    # ---- Hoisted input projection for the forward direction (one matmul),
    # bias folded in once.
    xw = (jnp.dot(x, wih_f_ref[...], preferred_element_type=jnp.float32)
          + b_f_ref[...])                                      # (T*B, 4H) f32

    whh_f = whh_f_ref[...]                                     # (H, 4H) bf16

    # ---- Forward recurrence, statically unrolled (T compile-time known).
    # t = 0: h is zero, so the h @ W_hh matmul is skipped.
    h, c = apply_gates(xw[0:B, :], zeros_bh)
    for t in range(1, T):
        gates = xw[t * B:(t + 1) * B, :] + jnp.dot(
            h.astype(jnp.bfloat16), whh_f, preferred_element_type=jnp.float32)
        h, c = apply_gates(gates, c)

    # ---- Head: dropout(p=0.5) is identity in eval mode; fc Linear.
    # TODO(synk): training-mode dropout (pltpu.prng_* masking) not implemented.
    feat = jnp.concatenate([h, h_bwd], axis=-1).astype(jnp.bfloat16)   # (B, 2H)
    out_ref[...] = (jnp.dot(feat, wfc_ref[...],
                            preferred_element_type=jnp.float32) + bfc_ref[...])


def _reorder_gates(a):
    """Permute PyTorch LSTM gate blocks [i, f, g, o] -> [i, f, o, g] (axis 0)."""
    H = HIDDEN
    return jnp.concatenate([a[0:H], a[H:2 * H], a[3 * H:4 * H], a[2 * H:3 * H]],
                           axis=0)


def spelling_rnn_forward(x, params):
    """x: (B, T, N_MFCC) float32  ->  logits (B, NUM_CLASSES) float32."""
    B, T, I = x.shape
    H = HIDDEN

    # Time-major, flattened: rows [t*B:(t+1)*B] of x2d == x[:, t, :].
    x2d = jnp.transpose(x, (1, 0, 2)).reshape(T * B, I).astype(jnp.bfloat16)

    wih_f = _reorder_gates(params["w_ih_f"]).T.astype(jnp.bfloat16)     # (I, 4H)
    whh_f = _reorder_gates(params["w_hh_f"]).T.astype(jnp.bfloat16)     # (H, 4H)
    b_f = _reorder_gates(params["b_ih_f"] + params["b_hh_f"])[None, :]  # (1, 4H)
    wih_b = _reorder_gates(params["w_ih_b"]).T.astype(jnp.bfloat16)
    b_b = _reorder_gates(params["b_ih_b"] + params["b_hh_b"])[None, :]
    # w_hh_b is intentionally not passed: the reverse direction only needs its
    # first step (zero hidden state), so its hidden-to-hidden term is zero.

    # fc weights padded to a lane-dense (..., 128) output; sliced back below.
    wfc = jnp.zeros((2 * H, C_PAD), jnp.float32)
    wfc = wfc.at[:, :NUM_CLASSES].set(params["w_fc"].T).astype(jnp.bfloat16)
    bfc = jnp.zeros((1, C_PAD), jnp.float32).at[0, :NUM_CLASSES].set(params["b_fc"])

    vmem = pl.BlockSpec(memory_space=pltpu.MemorySpace.VMEM)
    out_padded = pl.pallas_call(
        functools.partial(spelling_rnn_kernel, T=T, B=B, H=H),
        out_shape=jax.ShapeDtypeStruct((B, C_PAD), jnp.float32),
        in_specs=[vmem] * 8,
        out_specs=vmem,
    )(x2d, wih_f, whh_f, b_f, wih_b, b_b, wfc, bfc)
    return out_padded[:, :NUM_CLASSES]


def reference_forward(x, params):
    """Pure-JAX f32 reference of the same semantics (sanity check)."""
    B, T, I = x.shape
    H = HIDDEN

    def cell(x_t, h, c, wih, whh, b):
        g = x_t @ wih.T + h @ whh.T + b
        i = jax.nn.sigmoid(g[:, 0 * H:1 * H])
        f = jax.nn.sigmoid(g[:, 1 * H:2 * H])
        gg = jnp.tanh(g[:, 2 * H:3 * H])
        o = jax.nn.sigmoid(g[:, 3 * H:4 * H])
        c = f * c + i * gg
        return o * jnp.tanh(c), c

    h = jnp.zeros((B, H), jnp.float32)
    c = jnp.zeros((B, H), jnp.float32)
    bf = params["b_ih_f"] + params["b_hh_f"]
    for t in range(T):
        h, c = cell(x[:, t, :], h, c, params["w_ih_f"], params["w_hh_f"], bf)
    bb = params["b_ih_b"] + params["b_hh_b"]
    hb, _ = cell(x[:, T - 1, :], jnp.zeros((B, H)), jnp.zeros((B, H)),
                 params["w_ih_b"], params["w_hh_b"], bb)
    feat = jnp.concatenate([h, hb], axis=-1)
    return feat @ params["w_fc"].T + params["b_fc"]


def init_params(key):
    """Deterministic synthetic parameters matching nn.LSTM / nn.Linear shapes."""
    H, I, C = HIDDEN, N_MFCC, NUM_CLASSES
    scale = 1.0 / jnp.sqrt(H)
    ks = jax.random.split(key, 10)
    u = lambda k, shape: jax.random.uniform(k, shape, jnp.float32, -scale, scale)
    return {
        "w_ih_f": u(ks[0], (4 * H, I)),
        "w_hh_f": u(ks[1], (4 * H, H)),
        "b_ih_f": u(ks[2], (4 * H,)),
        "b_hh_f": u(ks[3], (4 * H,)),
        "w_ih_b": u(ks[4], (4 * H, I)),
        "w_hh_b": u(ks[5], (4 * H, H)),
        "b_ih_b": u(ks[6], (4 * H,)),
        "b_hh_b": u(ks[7], (4 * H,)),
        "w_fc":   u(ks[8], (C, 2 * H)),
        "b_fc":   u(ks[9], (C,)),
    }


if __name__ == "__main__":
    key = jax.random.PRNGKey(0)
    k_x, k_p = jax.random.split(key)

    B, T = 2, 8
    x = jax.random.normal(k_x, (B, T, N_MFCC), jnp.float32)
    params = init_params(k_p)

    logits = spelling_rnn_forward(x, params)
    logits = jax.block_until_ready(logits)

    ref = reference_forward(x, params)
    assert logits.shape == (B, NUM_CLASSES)
    # bf16 matmul operands with f32 accumulation -> slightly looser tolerance.
    assert jnp.allclose(logits, ref, atol=2e-2, rtol=2e-2), "mismatch vs reference"

    print("KERNEL_OK")
</pallas_src>

<mosaic_0001>
module attributes {stable_mosaic.version = 11 : i64} {
  func.func @spelling_rnn_kernel(%arg0: memref<16x40xbf16, #tpu.memory_space<vmem>>, %arg1: memref<40x512xbf16, #tpu.memory_space<vmem>>, %arg2: memref<128x512xbf16, #tpu.memory_space<vmem>>, %arg3: memref<1x512xf32, #tpu.memory_space<vmem>>, %arg4: memref<40x512xbf16, #tpu.memory_space<vmem>>, %arg5: memref<1x512xf32, #tpu.memory_space<vmem>>, %arg6: memref<256x128xbf16, #tpu.memory_space<vmem>>, %arg7: memref<1x128xf32, #tpu.memory_space<vmem>>, %arg8: memref<2x128xf32, #tpu.memory_space<vmem>>) attributes {dimension_semantics = [], scalar_prefetch = 0 : i64, scratch_operands = 0 : i64, tpu.core_type = #tpu.core_type<tc>} {
    %c0 = arith.constant 0 : index
    %c0_0 = arith.constant 0 : index
    %0 = vector.load %arg0[%c0, %c0_0] : memref<16x40xbf16, #tpu.memory_space<vmem>>, vector<16x40xbf16>
    %cst = arith.constant 0.000000e+00 : f32
    %1 = vector.broadcast %cst : f32 to vector<2x128xf32>
    %2 = vector.extract_strided_slice %0 {offsets = [14, 0], sizes = [2, 40], strides = [1, 1]} : vector<16x40xbf16> to vector<2x40xbf16>
    %c0_1 = arith.constant 0 : index
    %c0_2 = arith.constant 0 : index
    %3 = vector.load %arg4[%c0_1, %c0_2] : memref<40x512xbf16, #tpu.memory_space<vmem>>, vector<40x512xbf16>
    %cst_3 = arith.constant dense<0.000000e+00> : vector<2x512xf32>
    %4 = tpu.matmul %2, %3, %cst_3 {dimension_numbers = #tpu.dot_dimension_numbers<[1], [0], [0], [1], [0, 0, 1, 1], [], []>} : vector<2x40xbf16>, vector<40x512xbf16>, vector<2x512xf32> -> vector<2x512xf32>
    %c0_4 = arith.constant 0 : index
    %c0_5 = arith.constant 0 : index
    %5 = vector.load %arg5[%c0_4, %c0_5] : memref<1x512xf32, #tpu.memory_space<vmem>>, vector<1x512xf32>
    %6 = vector.broadcast %5 : vector<1x512xf32> to vector<2x512xf32>
    %7 = arith.addf %4, %6 : vector<2x512xf32>
    %8 = vector.extract_strided_slice %7 {offsets = [0, 0], sizes = [2, 384], strides = [1, 1]} : vector<2x512xf32> to vector<2x384xf32>
    %9 = arith.negf %8 : vector<2x384xf32>
    %10 = math.exp %9 : vector<2x384xf32>
    %cst_6 = arith.constant 1.000000e+00 : f32
    %11 = vector.broadcast %cst_6 : f32 to vector<2x384xf32>
    %12 = arith.addf %11, %10 : vector<2x384xf32>
    %13 = arith.divf %11, %12 : vector<2x384xf32>
    %14 = vector.extract_strided_slice %13 {offsets = [0, 0], sizes = [2, 128], strides = [1, 1]} : vector<2x384xf32> to vector<2x128xf32>
    %15 = vector.extract_strided_slice %13 {offsets = [0, 128], sizes = [2, 128], strides = [1, 1]} : vector<2x384xf32> to vector<2x128xf32>
    %16 = vector.extract_strided_slice %13 {offsets = [0, 256], sizes = [2, 128], strides = [1, 1]} : vector<2x384xf32> to vector<2x128xf32>
    %17 = vector.extract_strided_slice %7 {offsets = [0, 384], sizes = [2, 128], strides = [1, 1]} : vector<2x512xf32> to vector<2x128xf32>
    %18 = math.tanh %17 : vector<2x128xf32>
    %19 = arith.mulf %15, %1 : vector<2x128xf32>
    %20 = arith.mulf %14, %18 : vector<2x128xf32>
    %21 = arith.addf %19, %20 : vector<2x128xf32>
    %22 = math.tanh %21 : vector<2x128xf32>
    %23 = arith.mulf %16, %22 : vector<2x128xf32>
    %c0_7 = arith.constant 0 : index
    %c0_8 = arith.constant 0 : index
    %24 = vector.load %arg1[%c0_7, %c0_8] : memref<40x512xbf16, #tpu.memory_space<vmem>>, vector<40x512xbf16>
    %cst_9 = arith.constant dense<0.000000e+00> : vector<16x512xf32>
    %25 = tpu.matmul %0, %24, %cst_9 {dimension_numbers = #tpu.dot_dimension_numbers<[1], [0], [0], [1], [0, 0, 1, 1], [], []>} : vector<16x40xbf16>, vector<40x512xbf16>, vector<16x512xf32> -> vector<16x512xf32>
    %c0_10 = arith.constant 0 : index
    %c0_11 = arith.constant 0 : index
    %26 = vector.load %arg3[%c0_10, %c0_11] : memref<1x512xf32, #tpu.memory_space<vmem>>, vector<1x512xf32>
    %27 = vector.broadcast %26 : vector<1x512xf32> to vector<16x512xf32>
    %28 = arith.addf %25, %27 : vector<16x512xf32>
    %c0_12 = arith.constant 0 : index
    %c0_13 = arith.constant 0 : index
    %29 = vector.load %arg2[%c0_12, %c0_13] : memref<128x512xbf16, #tpu.memory_space<vmem>>, vector<128x512xbf16>
    %30 = vector.extract_strided_slice %28 {offsets = [0, 0], sizes = [2, 512], strides = [1, 1]} : vector<16x512xf32> to vector<2x512xf32>
    %31 = vector.extract_strided_slice %30 {offsets = [0, 0], sizes = [2, 384], strides = [1, 1]} : vector<2x512xf32> to vector<2x384xf32>
    %32 = arith.negf %31 : vector<2x384xf32>
    %33 = math.exp %32 : vector<2x384xf32>
    %cst_14 = arith.constant 1.000000e+00 : f32
    %34 = vector.broadcast %cst_14 : f32 to vector<2x384xf32>
    %35 = arith.addf %34, %33 : vector<2x384xf32>
    %36 = arith.divf %34, %35 : vector<2x384xf32>
    %37 = vector.extract_strided_slice %36 {offsets = [0, 0], sizes = [2, 128], strides = [1, 1]} : vector<2x384xf32> to vector<2x128xf32>
    %38 = vector.extract_strided_slice %36 {offsets = [0, 128], sizes = [2, 128], strides = [1, 1]} : vector<2x384xf32> to vector<2x128xf32>
    %39 = vector.extract_strided_slice %36 {offsets = [0, 256], sizes = [2, 128], strides = [1, 1]} : vector<2x384xf32> to vector<2x128xf32>
    %40 = vector.extract_strided_slice %30 {offsets = [0, 384], sizes = [2, 128], strides = [1, 1]} : vector<2x512xf32> to vector<2x128xf32>
    %41 = math.tanh %40 : vector<2x128xf32>
    %42 = arith.mulf %38, %1 : vector<2x128xf32>
    %43 = arith.mulf %37, %41 : vector<2x128xf32>
    %44 = arith.addf %42, %43 : vector<2x128xf32>
    %45 = math.tanh %44 : vector<2x128xf32>
    %46 = arith.mulf %39, %45 : vector<2x128xf32>
    %47 = vector.extract_strided_slice %28 {offsets = [2, 0], sizes = [2, 512], strides = [1, 1]} : vector<16x512xf32> to vector<2x512xf32>
    %48 = arith.truncf %46 : vector<2x128xf32> to vector<2x128xbf16>
    %cst_15 = arith.constant dense<0.000000e+00> : vector<2x512xf32>
    %49 = tpu.matmul %48, %29, %cst_15 {dimension_numbers = #tpu.dot_dimension_numbers<[1], [0], [0], [1], [0, 0, 1, 1], [], []>} : vector<2x128xbf16>, vector<128x512xbf16>, vector<2x512xf32> -> vector<2x512xf32>
    %50 = arith.addf %47, %49 : vector<2x512xf32>
    %51 = vector.extract_strided_slice %50 {offsets = [0, 0], sizes = [2, 384], strides = [1, 1]} : vector<2x512xf32> to vector<2x384xf32>
    %52 = arith.negf %51 : vector<2x384xf32>
    %53 = math.exp %52 : vector<2x384xf32>
    %cst_16 = arith.constant 1.000000e+00 : f32
    %54 = vector.broadcast %cst_16 : f32 to vector<2x384xf32>
    %55 = arith.addf %54, %53 : vector<2x384xf32>
    %56 = arith.divf %54, %55 : vector<2x384xf32>
    %57 = vector.extract_strided_slice %56 {offsets = [0, 0], sizes = [2, 128], strides = [1, 1]} : vector<2x384xf32> to vector<2x128xf32>
    %58 = vector.extract_strided_slice %56 {offsets = [0, 128], sizes = [2, 128], strides = [1, 1]} : vector<2x384xf32> to vector<2x128xf32>
    %59 = vector.extract_strided_slice %56 {offsets = [0, 256], sizes = [2, 128], strides = [1, 1]} : vector<2x384xf32> to vector<2x128xf32>
    %60 = vector.extract_strided_slice %50 {offsets = [0, 384], sizes = [2, 128], strides = [1, 1]} : vector<2x512xf32> to vector<2x128xf32>
    %61 = math.tanh %60 : vector<2x128xf32>
    %62 = arith.mulf %58, %44 : vector<2x128xf32>
    %63 = arith.mulf %57, %61 : vector<2x128xf32>
    %64 = arith.addf %62, %63 : vector<2x128xf32>
    %65 = math.tanh %64 : vector<2x128xf32>
    %66 = arith.mulf %59, %65 : vector<2x128xf32>
    %67 = vector.extract_strided_slice %28 {offsets = [4, 0], sizes = [2, 512], strides = [1, 1]} : vector<16x512xf32> to vector<2x512xf32>
    %68 = arith.truncf %66 : vector<2x128xf32> to vector<2x128xbf16>
    %cst_17 = arith.constant dense<0.000000e+00> : vector<2x512xf32>
    %69 = tpu.matmul %68, %29, %cst_17 {dimension_numbers = #tpu.dot_dimension_numbers<[1], [0], [0], [1], [0, 0, 1, 1], [], []>} : vector<2x128xbf16>, vector<128x512xbf16>, vector<2x512xf32> -> vector<2x512xf32>
    %70 = arith.addf %67, %69 : vector<2x512xf32>
    %71 = vector.extract_strided_slice %70 {offsets = [0, 0], sizes = [2, 384], strides = [1, 1]} : vector<2x512xf32> to vector<2x384xf32>
    %72 = arith.negf %71 : vector<2x384xf32>
    %73 = math.exp %72 : vector<2x384xf32>
    %cst_18 = arith.constant 1.000000e+00 : f32
    %74 = vector.broadcast %cst_18 : f32 to vector<2x384xf32>
    %75 = arith.addf %74, %73 : vector<2x384xf32>
    %76 = arith.divf %74, %75 : vector<2x384xf32>
    %77 = vector.extract_strided_slice %76 {offsets = [0, 0], sizes = [2, 128], strides = [1, 1]} : vector<2x384xf32> to vector<2x128xf32>
    %78 = vector.extract_strided_slice %76 {offsets = [0, 128], sizes = [2, 128], strides = [1, 1]} : vector<2x384xf32> to vector<2x128xf32>
    %79 = vector.extract_strided_slice %76 {offsets = [0, 256], sizes = [2, 128], strides = [1, 1]} : vector<2x384xf32> to vector<2x128xf32>
    %80 = vector.extract_strided_slice %70 {offsets = [0, 384], sizes = [2, 128], strides = [1, 1]} : vector<2x512xf32> to vector<2x128xf32>
    %81 = math.tanh %80 : vector<2x128xf32>
    %82 = arith.mulf %78, %64 : vector<2x128xf32>
    %83 = arith.mulf %77, %81 : vector<2x128xf32>
    %84 = arith.addf %82, %83 : vector<2x128xf32>
    %85 = math.tanh %84 : vector<2x128xf32>
    %86 = arith.mulf %79, %85 : vector<2x128xf32>
    %87 = vector.extract_strided_slice %28 {offsets = [6, 0], sizes = [2, 512], strides = [1, 1]} : vector<16x512xf32> to vector<2x512xf32>
    %88 = arith.truncf %86 : vector<2x128xf32> to vector<2x128xbf16>
    %cst_19 = arith.constant dense<0.000000e+00> : vector<2x512xf32>
    %89 = tpu.matmul %88, %29, %cst_19 {dimension_numbers = #tpu.dot_dimension_numbers<[1], [0], [0], [1], [0, 0, 1, 1], [], []>} : vector<2x128xbf16>, vector<128x512xbf16>, vector<2x512xf32> -> vector<2x512xf32>
    %90 = arith.addf %87, %89 : vector<2x512xf32>
    %91 = vector.extract_strided_slice %90 {offsets = [0, 0], sizes = [2, 384], strides = [1, 1]} : vector<2x512xf32> to vector<2x384xf32>
    %92 = arith.negf %91 : vector<2x384xf32>
    %93 = math.exp %92 : vector<2x384xf32>
    %cst_20 = arith.constant 1.000000e+00 : f32
    %94 = vector.broadcast %cst_20 : f32 to vector<2x384xf32>
    %95 = arith.addf %94, %93 : vector<2x384xf32>
    %96 = arith.divf %94, %95 : vector<2x384xf32>
    %97 = vector.extract_strided_slice %96 {offsets = [0, 0], sizes = [2, 128], strides = [1, 1]} : vector<2x384xf32> to vector<2x128xf32>
    %98 = vector.extract_strided_slice %96 {offsets = [0, 128], sizes = [2, 128], strides = [1, 1]} : vector<2x384xf32> to vector<2x128xf32>
    %99 = vector.extract_strided_slice %96 {offsets = [0, 256], sizes = [2, 128], strides = [1, 1]} : vector<2x384xf32> to vector<2x128xf32>
    %100 = vector.extract_strided_slice %90 {offsets = [0, 384], sizes = [2, 128], strides = [1, 1]} : vector<2x512xf32> to vector<2x128xf32>
    %101 = math.tanh %100 : vector<2x128xf32>
    %102 = arith.mulf %98, %84 : vector<2x128xf32>
    %103 = arith.mulf %97, %101 : vector<2x128xf32>
    %104 = arith.addf %102, %103 : vector<2x128xf32>
    %105 = math.tanh %104 : vector<2x128xf32>
    %106 = arith.mulf %99, %105 : vector<2x128xf32>
    %107 = vector.extract_strided_slice %28 {offsets = [8, 0], sizes = [2, 512], strides = [1, 1]} : vector<16x512xf32> to vector<2x512xf32>
    %108 = arith.truncf %106 : vector<2x128xf32> to vector<2x128xbf16>
    %cst_21 = arith.constant dense<0.000000e+00> : vector<2x512xf32>
    %109 = tpu.matmul %108, %29, %cst_21 {dimension_numbers = #tpu.dot_dimension_numbers<[1], [0], [0], [1], [0, 0, 1, 1], [], []>} : vector<2x128xbf16>, vector<128x512xbf16>, vector<2x512xf32> -> vector<2x512xf32>
    %110 = arith.addf %107, %109 : vector<2x512xf32>
    %111 = vector.extract_strided_slice %110 {offsets = [0, 0], sizes = [2, 384], strides = [1, 1]} : vector<2x512xf32> to vector<2x384xf32>
    %112 = arith.negf %111 : vector<2x384xf32>
    %113 = math.exp %112 : vector<2x384xf32>
    %cst_22 = arith.constant 1.000000e+00 : f32
    %114 = vector.broadcast %cst_22 : f32 to vector<2x384xf32>
    %115 = arith.addf %114, %113 : vector<2x384xf32>
    %116 = arith.divf %114, %115 : vector<2x384xf32>
    %117 = vector.extract_strided_slice %116 {offsets = [0, 0], sizes = [2, 128], strides = [1, 1]} : vector<2x384xf32> to vector<2x128xf32>
    %118 = vector.extract_strided_slice %116 {offsets = [0, 128], sizes = [2, 128], strides = [1, 1]} : vector<2x384xf32> to vector<2x128xf32>
    %119 = vector.extract_strided_slice %116 {offsets = [0, 256], sizes = [2, 128], strides = [1, 1]} : vector<2x384xf32> to vector<2x128xf32>
    %120 = vector.extract_strided_slice %110 {offsets = [0, 384], sizes = [2, 128], strides = [1, 1]} : vector<2x512xf32> to vector<2x128xf32>
    %121 = math.tanh %120 : vector<2x128xf32>
    %122 = arith.mulf %118, %104 : vector<2x128xf32>
    %123 = arith.mulf %117, %121 : vector<2x128xf32>
    %124 = arith.addf %122, %123 : vector<2x128xf32>
    %125 = math.tanh %124 : vector<2x128xf32>
    %126 = arith.mulf %119, %125 : vector<2x128xf32>
    %127 = vector.extract_strided_slice %28 {offsets = [10, 0], sizes = [2, 512], strides = [1, 1]} : vector<16x512xf32> to vector<2x512xf32>
    %128 = arith.truncf %126 : vector<2x128xf32> to vector<2x128xbf16>
    %cst_23 = arith.constant dense<0.000000e+00> : vector<2x512xf32>
    %129 = tpu.matmul %128, %29, %cst_23 {dimension_numbers = #tpu.dot_dimension_numbers<[1], [0], [0], [1], [0, 0, 1, 1], [], []>} : vector<2x128xbf16>, vector<128x512xbf16>, vector<2x512xf32> -> vector<2x512xf32>
    %130 = arith.addf %127, %129 : vector<2x512xf32>
    %131 = vector.extract_strided_slice %130 {offsets = [0, 0], sizes = [2, 384], strides = [1, 1]} : vector<2x512xf32> to vector<2x384xf32>
    %132 = arith.negf %131 : vector<2x384xf32>
    %133 = math.exp %132 : vector<2x384xf32>
    %cst_24 = arith.constant 1.000000e+00 : f32
    %134 = vector.broadcast %cst_24 : f32 to vector<2x384xf32>
    %135 = arith.addf %134, %133 : vector<2x384xf32>
    %136 = arith.divf %134, %135 : vector<2x384xf32>
    %137 = vector.extract_strided_slice %136 {offsets = [0, 0], sizes = [2, 128], strides = [1, 1]} : vector<2x384xf32> to vector<2x128xf32>
    %138 = vector.extract_strided_slice %136 {offsets = [0, 128], sizes = [2, 128], strides = [1, 1]} : vector<2x384xf32> to vector<2x128xf32>
    %139 = vector.extract_strided_slice %136 {offsets = [0, 256], sizes = [2, 128], strides = [1, 1]} : vector<2x384xf32> to vector<2x128xf32>
    %140 = vector.extract_strided_slice %130 {offsets = [0, 384], sizes = [2, 128], strides = [1, 1]} : vector<2x512xf32> to vector<2x128xf32>
    %141 = math.tanh %140 : vector<2x128xf32>
    %142 = arith.mulf %138, %124 : vector<2x128xf32>
    %143 = arith.mulf %137, %141 : vector<2x128xf32>
    %144 = arith.addf %142, %143 : vector<2x128xf32>
    %145 = math.tanh %144 : vector<2x128xf32>
    %146 = arith.mulf %139, %145 : vector<2x128xf32>
    %147 = vector.extract_strided_slice %28 {offsets = [12, 0], sizes = [2, 512], strides = [1, 1]} : vector<16x512xf32> to vector<2x512xf32>
    %148 = arith.truncf %146 : vector<2x128xf32> to vector<2x128xbf16>
    %cst_25 = arith.constant dense<0.000000e+00> : vector<2x512xf32>
    %149 = tpu.matmul %148, %29, %cst_25 {dimension_numbers = #tpu.dot_dimension_numbers<[1], [0], [0], [1], [0, 0, 1, 1], [], []>} : vector<2x128xbf16>, vector<128x512xbf16>, vector<2x512xf32> -> vector<2x512xf32>
    %150 = arith.addf %147, %149 : vector<2x512xf32>
    %151 = vector.extract_strided_slice %150 {offsets = [0, 0], sizes = [2, 384], strides = [1, 1]} : vector<2x512xf32> to vector<2x384xf32>
    %152 = arith.negf %151 : vector<2x384xf32>
    %153 = math.exp %152 : vector<2x384xf32>
    %cst_26 = arith.constant 1.000000e+00 : f32
    %154 = vector.broadcast %cst_26 : f32 to vector<2x384xf32>
    %155 = arith.addf %154, %153 : vector<2x384xf32>
    %156 = arith.divf %154, %155 : vector<2x384xf32>
    %157 = vector.extract_strided_slice %156 {offsets = [0, 0], sizes = [2, 128], strides = [1, 1]} : vector<2x384xf32> to vector<2x128xf32>
    %158 = vector.extract_strided_slice %156 {offsets = [0, 128], sizes = [2, 128], strides = [1, 1]} : vector<2x384xf32> to vector<2x128xf32>
    %159 = vector.extract_strided_slice %156 {offsets = [0, 256], sizes = [2, 128], strides = [1, 1]} : vector<2x384xf32> to vector<2x128xf32>
    %160 = vector.extract_strided_slice %150 {offsets = [0, 384], sizes = [2, 128], strides = [1, 1]} : vector<2x512xf32> to vector<2x128xf32>
    %161 = math.tanh %160 : vector<2x128xf32>
    %162 = arith.mulf %158, %144 : vector<2x128xf32>
    %163 = arith.mulf %157, %161 : vector<2x128xf32>
    %164 = arith.addf %162, %163 : vector<2x128xf32>
    %165 = math.tanh %164 : vector<2x128xf32>
    %166 = arith.mulf %159, %165 : vector<2x128xf32>
    %167 = vector.extract_strided_slice %28 {offsets = [14, 0], sizes = [2, 512], strides = [1, 1]} : vector<16x512xf32> to vector<2x512xf32>
    %168 = arith.truncf %166 : vector<2x128xf32> to vector<2x128xbf16>
    %cst_27 = arith.constant dense<0.000000e+00> : vector<2x512xf32>
    %169 = tpu.matmul %168, %29, %cst_27 {dimension_numbers = #tpu.dot_dimension_numbers<[1], [0], [0], [1], [0, 0, 1, 1], [], []>} : vector<2x128xbf16>, vector<128x512xbf16>, vector<2x512xf32> -> vector<2x512xf32>
    %170 = arith.addf %167, %169 : vector<2x512xf32>
    %171 = vector.extract_strided_slice %170 {offsets = [0, 0], sizes = [2, 384], strides = [1, 1]} : vector<2x512xf32> to vector<2x384xf32>
    %172 = arith.negf %171 : vector<2x384xf32>
    %173 = math.exp %172 : vector<2x384xf32>
    %cst_28 = arith.constant 1.000000e+00 : f32
    %174 = vector.broadcast %cst_28 : f32 to vector<2x384xf32>
    %175 = arith.addf %174, %173 : vector<2x384xf32>
    %176 = arith.divf %174, %175 : vector<2x384xf32>
    %177 = vector.extract_strided_slice %176 {offsets = [0, 0], sizes = [2, 128], strides = [1, 1]} : vector<2x384xf32> to vector<2x128xf32>
    %178 = vector.extract_strided_slice %176 {offsets = [0, 128], sizes = [2, 128], strides = [1, 1]} : vector<2x384xf32> to vector<2x128xf32>
    %179 = vector.extract_strided_slice %176 {offsets = [0, 256], sizes = [2, 128], strides = [1, 1]} : vector<2x384xf32> to vector<2x128xf32>
    %180 = vector.extract_strided_slice %170 {offsets = [0, 384], sizes = [2, 128], strides = [1, 1]} : vector<2x512xf32> to vector<2x128xf32>
    %181 = math.tanh %180 : vector<2x128xf32>
    %182 = arith.mulf %178, %164 : vector<2x128xf32>
    %183 = arith.mulf %177, %181 : vector<2x128xf32>
    %184 = arith.addf %182, %183 : vector<2x128xf32>
    %185 = math.tanh %184 : vector<2x128xf32>
    %186 = arith.mulf %179, %185 : vector<2x128xf32>
    %187 = tpu.concatenate %186, %23 in 1 : vector<2x128xf32>, vector<2x128xf32> -> vector<2x256xf32>
    %188 = arith.truncf %187 : vector<2x256xf32> to vector<2x256xbf16>
    %c0_29 = arith.constant 0 : index
    %c0_30 = arith.constant 0 : index
    %189 = vector.load %arg6[%c0_29, %c0_30] : memref<256x128xbf16, #tpu.memory_space<vmem>>, vector<256x128xbf16>
    %cst_31 = arith.constant dense<0.000000e+00> : vector<2x128xf32>
    %190 = tpu.matmul %188, %189, %cst_31 {dimension_numbers = #tpu.dot_dimension_numbers<[1], [0], [0], [1], [0, 0, 1, 1], [], []>} : vector<2x256xbf16>, vector<256x128xbf16>, vector<2x128xf32> -> vector<2x128xf32>
    %c0_32 = arith.constant 0 : index
    %c0_33 = arith.constant 0 : index
    %191 = vector.load %arg7[%c0_32, %c0_33] : memref<1x128xf32, #tpu.memory_space<vmem>>, vector<1x128xf32>
    %192 = vector.broadcast %191 : vector<1x128xf32> to vector<2x128xf32>
    %193 = arith.addf %190, %192 : vector<2x128xf32>
    %c0_34 = arith.constant 0 : index
    %c0_35 = arith.constant 0 : index
    %194 = vector.load %arg8[%c0_34, %c0_35] : memref<2x128xf32, #tpu.memory_space<vmem>>, vector<2x128xf32>
    tpu.vector_store %arg8[%c0_34, %c0_35], %193 {strides = array<i32>} : memref<2x128xf32, #tpu.memory_space<vmem>>, vector<2x128xf32>,
    return
  }
}

</mosaic_0001>

<llo_original>
// kernel: tpu_custom_call.1
$region0: #{tpu_custom_call.1}
  #allocation0 [shape = 'u32[]', space=smem, size = 0x4, offset = 0x4, fixed_abs, tag = 'smem constant byte address 0x4 - core index']
  #allocation1 [shape = 'u32[72,128]{1,0:T(1,128)}', space=vmem, size = 0x9000, scoped, tag = 'internal scratch']
  %s0 = inlined_call_operand.hbm [shape: bf16[16,40], index: 0, kind: input, shape index: {}]
  %s1 = inlined_call_operand.hbm [shape: bf16[40,512], index: 1, kind: input, shape index: {}]
  %s2 = inlined_call_operand.hbm [shape: bf16[128,512], index: 2, kind: input, shape index: {}]
  %s3 = inlined_call_operand.hbm [shape: f32[1,512], index: 3, kind: input, shape index: {}]
  %s4 = inlined_call_operand.hbm [shape: bf16[40,512], index: 4, kind: input, shape index: {}]
  %s5 = inlined_call_operand.vmem [shape: f32[1,512], index: 5, kind: input, shape index: {}]
  %s6 = inlined_call_operand.hbm [shape: bf16[256,128], index: 6, kind: input, shape index: {}]
  %s7 = inlined_call_operand.vmem [shape: f32[1,128], index: 7, kind: input, shape index: {}]
  %s8 = inlined_call_operand.hbm [shape: f32[2,128], index: 8, kind: output, shape index: {}]
  %s9 = sld [smem:[#allocation0]]
  $region66: #{tpu_custom_call.1} parent=0
    _
  %s11 = ssub.s32 1, %s9
  %s12 = scalar_select 0, %s11, %s9
  $region1: #{tpu_custom_call.1} parent=0
    #allocation2 [shape = 'u8[4096]{0}', space=vmem, size = 0x1000, scoped, tag = 'input window, operand 0, single buffered']
    #allocation3 [shape = 's32[1]{0}', space=sflag, size = 0x4, scoped, tag = 'scoped memory for tpu_custom_call.1']
    #allocation4 [shape = 's32[1]{0}', space=sflag, size = 0x4, scoped, tag = 'scoped memory for tpu_custom_call.1']
    #allocation5 [shape = 'u8[40960]{0}', space=vmem, size = 0xa000, scoped, tag = 'input window, operand 1, single buffered']
    #allocation6 [shape = 's32[1]{0}', space=sflag, size = 0x4, scoped, tag = 'scoped memory for tpu_custom_call.1']
    #allocation7 [shape = 'u8[131072]{0}', space=vmem, size = 0x20000, scoped, tag = 'input window, operand 2, single buffered']
    #allocation8 [shape = 'u8[2048]{0}', space=vmem, size = 0x800, scoped, tag = 'input window, operand 3, single buffered']
    #allocation9 [shape = 's32[1]{0}', space=sflag, size = 0x4, scoped, tag = 'scoped memory for tpu_custom_call.1']
    #allocation10 [shape = 'u8[40960]{0}', space=vmem, size = 0xa000, scoped, tag = 'input window, operand 4, single buffered']
    #allocation11 [shape = 'u8[65536]{0}', space=vmem, size = 0x10000, scoped, tag = 'input window, operand 6, single buffered']
    #allocation12 [shape = 's32[1]{0}', space=sflag, size = 0x4, scoped, tag = 'scoped memory for tpu_custom_call.1']
    #allocation13 [shape = 'u8[1024]{0}', space=vmem, size = 0x400, scoped, tag = 'output window, operand 0, single buffered']
    %13 = vsyncpa [#allocation3], 0
    %14 = vsyncpa [#allocation6], 0
    %15 = vsyncpa [#allocation9], 0
    %16 = vsyncpa [#allocation12], 0
    %17 = vsyncpa [#allocation4], 0
    // Predicated region
    $region2: #{tpu_custom_call.1} parent=1 // pred_check
      _
    $region3: #{tpu_custom_call.1} parent=1 // pred_check_branch
      %19 = sbr.rel (0) target = $region5
    $region4: #{tpu_custom_call.1} parent=1 // pred_region
      %21 = vsyncadd [#allocation3], 0
      %s22 = sshll.u32 %s0, 4
      %s23 = int_to_ptr.hbm [resolvable:$true] %s22
      %s24 = sshll.u32 [#allocation2], 4
      %s25 = int_to_ptr.vmem [resolvable:$true] %s24
      %30 = dma.hbm_to_vmem [thread:$0]  %s23, 128, %s25, [#allocation3], 64, 64, 4
    $region5: #{tpu_custom_call.1} parent=1 // pred_fallthru
      _
    // Predicated region
    $region6: #{tpu_custom_call.1} parent=1 // pred_check
      _
    $region7: #{tpu_custom_call.1} parent=1 // pred_check_branch
      %32 = sbr.rel (0) target = $region9
    $region8: #{tpu_custom_call.1} parent=1 // pred_region
      %34 = vsyncadd [#allocation6], 0
      %s35 = sshll.u32 %s1, 4
      %s36 = int_to_ptr.hbm [resolvable:$true] %s35
      %s37 = sshll.u32 [#allocation5], 4
      %s38 = int_to_ptr.vmem [resolvable:$true] %s37
      %43 = dma.hbm_to_vmem [thread:$0]  %s36, 1280, %s38, [#allocation6], 256, 256, 16
    $region9: #{tpu_custom_call.1} parent=1 // pred_fallthru
      _
    // Predicated region
    $region10: #{tpu_custom_call.1} parent=1 // pred_check
      _
    $region11: #{tpu_custom_call.1} parent=1 // pred_check_branch
      %45 = sbr.rel (0) target = $region13
    $region12: #{tpu_custom_call.1} parent=1 // pred_region
      %47 = vsyncadd [#allocation6], 0
      %s48 = sshll.u32 %s2, 4
      %s49 = int_to_ptr.hbm [resolvable:$true] %s48
      %s50 = sshll.u32 [#allocation7], 4
      %s51 = int_to_ptr.vmem [resolvable:$true] %s50
      %56 = dma.hbm_to_vmem [thread:$0]  %s49, 4096, %s51, [#allocation6], 256, 256, 16
    $region13: #{tpu_custom_call.1} parent=1 // pred_fallthru
      _
    // Predicated region
    $region14: #{tpu_custom_call.1} parent=1 // pred_check
      _
    $region15: #{tpu_custom_call.1} parent=1 // pred_check_branch
      %58 = sbr.rel (0) target = $region17
    $region16: #{tpu_custom_call.1} parent=1 // pred_region
      %60 = vsyncadd [#allocation9], 0
      %s62 = sshll.u32 %s3, 4
      %s63 = int_to_ptr.hbm [resolvable:$true] %s62
      %s64 = sshll.u32 [#allocation8], 4
      %s65 = int_to_ptr.vmem [resolvable:$true] %s64
      %67 = dma.hbm_to_vmem [thread:$0]  %s63, 64, %s65, [#allocation9]
    $region17: #{tpu_custom_call.1} parent=1 // pred_fallthru
      _
    // Predicated region
    $region18: #{tpu_custom_call.1} parent=1 // pred_check
      _
    $region19: #{tpu_custom_call.1} parent=1 // pred_check_branch
      %69 = sbr.rel (0) target = $region21
    $region20: #{tpu_custom_call.1} parent=1 // pred_region
      %71 = vsyncadd [#allocation9], 0
      %s72 = sshll.u32 %s4, 4
      %s73 = int_to_ptr.hbm [resolvable:$true] %s72
      %s74 = sshll.u32 [#allocation10], 4
      %s75 = int_to_ptr.vmem [resolvable:$true] %s74
      %80 = dma.hbm_to_vmem [thread:$0]  %s73, 1280, %s75, [#allocation9], 256, 256, 16
    $region21: #{tpu_custom_call.1} parent=1 // pred_fallthru
      _
    // Predicated region
    $region22: #{tpu_custom_call.1} parent=1 // pred_check
      _
    $region23: #{tpu_custom_call.1} parent=1 // pred_check_branch
      %82 = sbr.rel (0) target = $region25
    $region24: #{tpu_custom_call.1} parent=1 // pred_region
      _
    $region25: #{tpu_custom_call.1} parent=1 // pred_fallthru
      _
    // Predicated region
    $region26: #{tpu_custom_call.1} parent=1 // pred_check
      _
    $region27: #{tpu_custom_call.1} parent=1 // pred_check_branch
      %84 = sbr.rel (0) target = $region29
    $region28: #{tpu_custom_call.1} parent=1 // pred_region
      %86 = vsyncadd [#allocation12], 0
      %s87 = sshll.u32 %s6, 4
      %s88 = int_to_ptr.hbm [resolvable:$true] %s87
      %s89 = sshll.u32 [#allocation11], 4
      %s90 = int_to_ptr.vmem [resolvable:$true] %s89
      %95 = dma.hbm_to_vmem [thread:$0]  %s88, 2048, %s90, [#allocation12], 64, 64, 4
    $region29: #{tpu_custom_call.1} parent=1 // pred_fallthru
      _
    // Predicated region
    $region30: #{tpu_custom_call.1} parent=1 // pred_check
      _
    $region31: #{tpu_custom_call.1} parent=1 // pred_check_branch
      %97 = sbr.rel (0) target = $region33
    $region32: #{tpu_custom_call.1} parent=1 // pred_region
      _
    $region33: #{tpu_custom_call.1} parent=1 // pred_fallthru
      _
    // Predicated region
    $region34: #{tpu_custom_call.1} parent=1 // pred_check
      _
    $region35: #{tpu_custom_call.1} parent=1 // pred_check_branch
      %99 = sbr.rel (0) target = $region37
    $region36: #{tpu_custom_call.1} parent=1 // pred_region
      %101 = dma.done [#allocation3], 128
    $region37: #{tpu_custom_call.1} parent=1 // pred_fallthru
      _
    // Predicated region
    $region38: #{tpu_custom_call.1} parent=1 // pred_check
      _
    $region39: #{tpu_custom_call.1} parent=1 // pred_check_branch
      %103 = sbr.rel (0) target = $region41
    $region40: #{tpu_custom_call.1} parent=1 // pred_region
      %105 = dma.done [#allocation6], 1280
    $region41: #{tpu_custom_call.1} parent=1 // pred_fallthru
      _
    // Predicated region
    $region42: #{tpu_custom_call.1} parent=1 // pred_check
      _
    $region43: #{tpu_custom_call.1} parent=1 // pred_check_branch
      %107 = sbr.rel (0) target = $region45
    $region44: #{tpu_custom_call.1} parent=1 // pred_region
      %109 = dma.done [#allocation6], 4096
    $region45: #{tpu_custom_call.1} parent=1 // pred_fallthru
      _
    // Predicated region
    $region46: #{tpu_custom_call.1} parent=1 // pred_check
      _
    $region47: #{tpu_custom_call.1} parent=1 // pred_check_branch
      %111 = sbr.rel (0) target = $region49
    $region48: #{tpu_custom_call.1} parent=1 // pred_region
      %113 = dma.done [#allocation9], 64
    $region49: #{tpu_custom_call.1} parent=1 // pred_fallthru
      _
    // Predicated region
    $region50: #{tpu_custom_call.1} parent=1 // pred_check
      _
    $region51: #{tpu_custom_call.1} parent=1 // pred_check_branch
      %115 = sbr.rel (0) target = $region53
    $region52: #{tpu_custom_call.1} parent=1 // pred_region
      %117 = dma.done [#allocation9], 1280
    $region53: #{tpu_custom_call.1} parent=1 // pred_fallthru
      _
    // Predicated region
    $region54: #{tpu_custom_call.1} parent=1 // pred_check
      _
    $region55: #{tpu_custom_call.1} parent=1 // pred_check_branch
      %119 = sbr.rel (0) target = $region57
    $region56: #{tpu_custom_call.1} parent=1 // pred_region
      %121 = dma.done [#allocation12], 2048
    $region57: #{tpu_custom_call.1} parent=1 // pred_fallthru
      _
    %v123 = vld [vmem:[#allocation2] sm:$0xf]
    %v124 = vld [vmem:[#allocation2 + $0x4] sm:$0xf]
    %v125 = vld [vmem:[#allocation10] sm:$0xff]
    %v126 = vld [vmem:[#allocation10 + $0x8] sm:$0xff]
    %v127 = vld [vmem:[#allocation10 + $0x10] sm:$0xff]
    %v128 = vld [vmem:[#allocation10 + $0x18] sm:$0xff]
    %v129 = vld [vmem:[#allocation10 + $0x20] sm:$0xff]
    %v130 = vld [vmem:[#allocation10 + $0x28] sm:$0xff]
    %v131 = vld [vmem:[#allocation10 + $0x30] sm:$0xff]
    %v132 = vld [vmem:[#allocation10 + $0x38] sm:$0xff]
    %v133 = vld [vmem:[#allocation10 + $0x40] sm:$0xff]
    %v134 = vld [vmem:[#allocation10 + $0x48] sm:$0xff]
    %v135 = vld [vmem:[%s5] sm:$0xf]
    %v137 = vperm.slane %v135, 0
    %v138 = vperm.slane %v135, 1
    %v139 = vperm.slane %v135, 2
    %v140 = vperm.slane %v135, 3
    %v146 = vunpack.c.l.b16 %v124
    %v147 = vpack.c.b16 %v146, %v146
    %v148 = vrot.slane %v147, 3
    %v159 = vunpack.c.l.b16 %v125
    %v160 = vunpack.c.h.b16 %v125
    %v161 = vunpack.c.l.b16 %v126
    %v162 = vunpack.c.h.b16 %v126
    %v163 = vunpack.c.l.b16 %v127
    %v164 = vunpack.c.h.b16 %v127
    %v165 = vunpack.c.l.b16 %v128
    %v166 = vunpack.c.h.b16 %v128
    %v167 = vunpack.c.l.b16 %v129
    %v168 = vunpack.c.h.b16 %v129
    %v169 = vunpack.c.l.b16 %v130
    %v170 = vunpack.c.h.b16 %v130
    %v171 = vunpack.c.l.b16 %v131
    %v172 = vunpack.c.h.b16 %v131
    %v173 = vunpack.c.l.b16 %v132
    %v174 = vunpack.c.h.b16 %v132
    %v175 = vunpack.c.l.b16 %v133
    %v176 = vunpack.c.h.b16 %v133
    %v177 = vunpack.c.l.b16 %v134
    %v178 = vunpack.c.h.b16 %v134
    %v179 = vpack.c.b16 %v163, %v159
    %v180 = vpack.c.b16 %v164, %v160
    %v181 = vpack.c.b16 %v165, %v161
    %v182 = vpack.c.b16 %v166, %v162
    %v183 = vpack.c.b16 %v171, %v167
    %v184 = vpack.c.b16 %v172, %v168
    %v185 = vpack.c.b16 %v173, %v169
    %v186 = vpack.c.b16 %v174, %v170
    %v187 = vpack.c.b16 %v175, %v175
    %v188 = vpack.c.b16 %v176, %v176
    %v189 = vpack.c.b16 %v177, %v177
    %v190 = vpack.c.b16 %v178, %v178
    %vm199 = vcmask 326656
    %v201 = vsel %vm199, %v148, 0
    %vm203 = vcmask 1043456
    %v205 = vsel %vm203, %v187, 0
    %v208 = vsel %vm203, %v188, 0
    %v211 = vsel %vm203, %v189, 0
    %v214 = vsel %vm203, %v190, 0
    %216 = vmatpush.bf16.msra.mxu0 0
    %217 = vmatpush.bf16.msra.mxu0 0
    %218 = vmatpush.bf16.msra.mxu0 0
    %219 = vmatpush.bf16.msra.mxu0 0
    %220 = vmatpush.bf16.msra.mxu0 0
    %221 = vmatpush.bf16.msra.mxu0 %v205
    %222 = vmatpush.bf16.msra.mxu0 %v183
    %223 = vmatpush.bf16.msra.mxu0 %v179
    %224 = vmatmul.bf16.gmra.mxu0 %v201
    %v225 = vpop.f32.mrf.mxu0
    %v226 = vadd.f32 %v137, %v225
    %v227 = vpop.f32.mrf.mxu0
    %228 = vdwg.mxu0
    %229 = vmatpush.bf16.msra.mxu0 0
    %230 = vmatpush.bf16.msra.mxu0 0
    %231 = vmatpush.bf16.msra.mxu0 0
    %232 = vmatpush.bf16.msra.mxu0 0
    %233 = vmatpush.bf16.msra.mxu0 0
    %234 = vmatpush.bf16.msra.mxu0 %v208
    %235 = vmatpush.bf16.msra.mxu0 %v184
    %236 = vmatpush.bf16.msra.mxu0 %v180
    %237 = vmatmul.bf16.gmra.mxu0 %v201
    %v238 = vpop.f32.mrf.mxu0
    %v239 = vadd.f32 %v138, %v238
    %v240 = vpop.f32.mrf.mxu0
    %241 = vdwg.mxu0
    %242 = vmatpush.bf16.msra.mxu0 0
    %243 = vmatpush.bf16.msra.mxu0 0
    %244 = vmatpush.bf16.msra.mxu0 0
    %245 = vmatpush.bf16.msra.mxu0 0
    %246 = vmatpush.bf16.msra.mxu0 0
    %247 = vmatpush.bf16.msra.mxu0 %v211
    %248 = vmatpush.bf16.msra.mxu0 %v185
    %249 = vmatpush.bf16.msra.mxu0 %v181
    %250 = vmatmul.bf16.gmra.mxu0 %v201
    %v251 = vpop.f32.mrf.mxu0
    %v252 = vadd.f32 %v139, %v251
    %v253 = vpop.f32.mrf.mxu0
    %254 = vdwg.mxu0
    %255 = vmatpush.bf16.msra.mxu0 0
    %256 = vmatpush.bf16.msra.mxu0 0
    %257 = vmatpush.bf16.msra.mxu0 0
    %258 = vmatpush.bf16.msra.mxu0 0
    %259 = vmatpush.bf16.msra.mxu0 0
    %260 = vmatpush.bf16.msra.mxu0 %v214
    %261 = vmatpush.bf16.msra.mxu0 %v186
    %262 = vmatpush.bf16.msra.mxu0 %v182
    %263 = vmatmul.bf16.gmra.mxu0 %v201
    %v264 = vpop.f32.mrf.mxu0
    %v265 = vadd.f32 %v140, %v264
    %v266 = vpop.f32.mrf.mxu0
    %267 = vdwg.mxu0
    %v268 = vxor.u32 %v226, 2147483648
    %v269 = vxor.u32 %v239, 2147483648
    %v270 = vxor.u32 %v252, 2147483648
    %v271 = vmul.f32 %v268, 1.442695
    %v272 = vpow.pop %v271
    %v273 = vmul.f32 %v269, 1.442695
    %v274 = vpow.pop %v273
    %v275 = vmul.f32 %v270, 1.442695
    %v276 = vpow.pop %v275
    %v277 = vadd.f32 %v272, 1.0
    %v278 = vadd.f32 %v274, 1.0
    %v279 = vadd.f32 %v276, 1.0
    %v280 = vrcp.pop %v277
    %v281 = vmul.f32 %v277, %v280
    %v282 = vsub.f32 1.0, %v281
    %v283 = vmul.f32 %v280, %v282
    %v284 = vadd.f32 %v280, %v283
    %vm285 = vweird.f32 %v277
    %vm286 = vweird.f32 %v280
    %vm287 = vmor %vm285, %vm286
    %v288 = vsel %vm287, %v280, %v284
    %v289 = vand.u32 2147483647, %v277
    %vm290 = vcmp.eq.f32.partialorder %v289, 8.507059e+37
    %v291 = vand.u32 %v277, 2147483648
    %v292 = vor.u32 1.1754944e-38, %v291
    %v293 = vsel %vm290, %v292, %v288
    %v294 = vmul.f32 1.0, %v293
    %v295 = vrcp.pop %v278
    %v296 = vmul.f32 %v278, %v295
    %v297 = vsub.f32 1.0, %v296
    %v298 = vmul.f32 %v295, %v297
    %v299 = vadd.f32 %v295, %v298
    %vm300 = vweird.f32 %v278
    %vm301 = vweird.f32 %v295
    %vm302 = vmor %vm300, %vm301
    %v303 = vsel %vm302, %v295, %v299
    %v304 = vand.u32 2147483647, %v278
    %vm305 = vcmp.eq.f32.partialorder %v304, 8.507059e+37
    %v306 = vand.u32 %v278, 2147483648
    %v307 = vor.u32 1.1754944e-38, %v306
    %v308 = vsel %vm305, %v307, %v303
    %v309 = vmul.f32 1.0, %v308
    %v310 = vrcp.pop %v279
    %v311 = vmul.f32 %v279, %v310
    %v312 = vsub.f32 1.0, %v311
    %v313 = vmul.f32 %v310, %v312
    %v314 = vadd.f32 %v310, %v313
    %vm315 = vweird.f32 %v279
    %vm316 = vweird.f32 %v310
    %vm317 = vmor %vm315, %vm316
    %v318 = vsel %vm317, %v310, %v314
    %v319 = vand.u32 2147483647, %v279
    %vm320 = vcmp.eq.f32.partialorder %v319, 8.507059e+37
    %v321 = vand.u32 %v279, 2147483648
    %v322 = vor.u32 1.1754944e-38, %v321
    %v323 = vsel %vm320, %v322, %v318
    %v324 = vmul.f32 1.0, %v323
    %v325 = vtanh.pop %v265
    %v326 = vmul.f32 %v309, 0.0
    %v327 = vmul.f32 %v294, %v325
    %v328 = vadd.f32 %v326, %v327
    %v329 = vtanh.pop %v328
    %v330 = vmul.f32 %v324, %v329
    %v331 = vld [vmem:[#allocation5] sm:$0xff]
    %v332 = vld [vmem:[#allocation5 + $0x8] sm:$0xff]
    %v333 = vld [vmem:[#allocation5 + $0x10] sm:$0xff]
    %v334 = vld [vmem:[#allocation5 + $0x18] sm:$0xff]
    %v335 = vld [vmem:[#allocation5 + $0x20] sm:$0xff]
    %v336 = vld [vmem:[#allocation5 + $0x28] sm:$0xff]
    %v337 = vld [vmem:[#allocation5 + $0x30] sm:$0xff]
    %v338 = vld [vmem:[#allocation5 + $0x38] sm:$0xff]
    %v339 = vld [vmem:[#allocation5 + $0x40] sm:$0xff]
    %v340 = vld [vmem:[#allocation5 + $0x48] sm:$0xff]
    %v341 = vld [vmem:[#allocation8] sm:$0xf]
    %v343 = vperm.slane %v341, 0
    %v344 = vperm.slane %v341, 1
    %v345 = vperm.slane %v341, 2
    %v346 = vperm.slane %v341, 3
    %v352 = vunpack.c.l.b16 %v123
    %v353 = vpack.c.b16 %v146, %v352
    %v364 = vunpack.c.l.b16 %v331
    %v365 = vunpack.c.h.b16 %v331
    %v366 = vunpack.c.l.b16 %v332
    %v367 = vunpack.c.h.b16 %v332
    %v368 = vunpack.c.l.b16 %v333
    %v369 = vunpack.c.h.b16 %v333
    %v370 = vunpack.c.l.b16 %v334
    %v371 = vunpack.c.h.b16 %v334
    %v372 = vunpack.c.l.b16 %v335
    %v373 = vunpack.c.h.b16 %v335
    %v374 = vunpack.c.l.b16 %v336
    %v375 = vunpack.c.h.b16 %v336
    %v376 = vunpack.c.l.b16 %v337
    %v377 = vunpack.c.h.b16 %v337
    %v378 = vunpack.c.l.b16 %v338
    %v379 = vunpack.c.h.b16 %v338
    %v380 = vunpack.c.l.b16 %v339
    %v381 = vunpack.c.h.b16 %v339
    %v382 = vunpack.c.l.b16 %v340
    %v383 = vunpack.c.h.b16 %v340
    %v384 = vpack.c.b16 %v368, %v364
    %v385 = vpack.c.b16 %v369, %v365
    %v386 = vpack.c.b16 %v370, %v366
    %v387 = vpack.c.b16 %v371, %v367
    %v388 = vpack.c.b16 %v376, %v372
    %v389 = vpack.c.b16 %v377, %v373
    %v390 = vpack.c.b16 %v378, %v374
    %v391 = vpack.c.b16 %v379, %v375
    %v392 = vpack.c.b16 %v380, %v380
    %v393 = vpack.c.b16 %v381, %v381
    %v394 = vpack.c.b16 %v382, %v382
    %v395 = vpack.c.b16 %v383, %v383
    %v405 = vsel %vm199, %v353, 0
    %v408 = vsel %vm203, %v392, 0
    %v411 = vsel %vm203, %v393, 0
    %v414 = vsel %vm203, %v394, 0
    %v417 = vsel %vm203, %v395, 0
    %419 = vmatpush.bf16.msra.mxu0 0
    %420 = vmatpush.bf16.msra.mxu0 0
    %421 = vmatpush.bf16.msra.mxu0 0
    %422 = vmatpush.bf16.msra.mxu0 0
    %423 = vmatpush.bf16.msra.mxu0 0
    %424 = vmatpush.bf16.msra.mxu0 %v408
    %425 = vmatpush.bf16.msra.mxu0 %v388
    %426 = vmatpush.bf16.msra.mxu0 %v384
    %427 = vmatmul.bf16.gmra.mxu0 %v405
    %v428 = vpop.f32.mrf.mxu0
    %v429 = vadd.f32 %v343, %v428
    %v430 = vpop.f32.mrf.mxu0
    %v431 = vadd.f32 %v343, %v430
    %432 = vdwg.mxu0
    %433 = vmatpush.bf16.msra.mxu0 0
    %434 = vmatpush.bf16.msra.mxu0 0
    %435 = vmatpush.bf16.msra.mxu0 0
    %436 = vmatpush.bf16.msra.mxu0 0
    %437 = vmatpush.bf16.msra.mxu0 0
    %438 = vmatpush.bf16.msra.mxu0 %v411
    %439 = vmatpush.bf16.msra.mxu0 %v389
    %440 = vmatpush.bf16.msra.mxu0 %v385
    %441 = vmatmul.bf16.gmra.mxu0 %v405
    %v442 = vpop.f32.mrf.mxu0
    %v443 = vadd.f32 %v344, %v442
    %v444 = vpop.f32.mrf.mxu0
    %v445 = vadd.f32 %v344, %v444
    %446 = vdwg.mxu0
    %447 = vmatpush.bf16.msra.mxu0 0
    %448 = vmatpush.bf16.msra.mxu0 0
    %449 = vmatpush.bf16.msra.mxu0 0
    %450 = vmatpush.bf16.msra.mxu0 0
    %451 = vmatpush.bf16.msra.mxu0 0
    %452 = vmatpush.bf16.msra.mxu0 %v414
    %453 = vmatpush.bf16.msra.mxu0 %v390
    %454 = vmatpush.bf16.msra.mxu0 %v386
    %455 = vmatmul.bf16.gmra.mxu0 %v405
    %v456 = vpop.f32.mrf.mxu0
    %v457 = vadd.f32 %v345, %v456
    %v458 = vpop.f32.mrf.mxu0
    %v459 = vadd.f32 %v345, %v458
    %460 = vdwg.mxu0
    %461 = vmatpush.bf16.msra.mxu0 0
    %462 = vmatpush.bf16.msra.mxu0 0
    %463 = vmatpush.bf16.msra.mxu0 0
    %464 = vmatpush.bf16.msra.mxu0 0
    %465 = vmatpush.bf16.msra.mxu0 0
    %466 = vmatpush.bf16.msra.mxu0 %v417
    %467 = vmatpush.bf16.msra.mxu0 %v391
    %468 = vmatpush.bf16.msra.mxu0 %v387
    %469 = vmatmul.bf16.gmra.mxu0 %v405
    %v470 = vpop.f32.mrf.mxu0
    %v471 = vadd.f32 %v346, %v470
    %v472 = vpop.f32.mrf.mxu0
    %v473 = vadd.f32 %v346, %v472
    %474 = vdwg.mxu0
    %v475 = vld [vmem:[#allocation7] sm:$0xff]
    %v476 = vld [vmem:[#allocation7 + $0x8] sm:$0xff]
    %v477 = vld [vmem:[#allocation7 + $0x10] sm:$0xff]
    %v478 = vld [vmem:[#allocation7 + $0x18] sm:$0xff]
    %v479 = vld [vmem:[#allocation7 + $0x20] sm:$0xff]
    %v480 = vld [vmem:[#allocation7 + $0x28] sm:$0xff]
    %v481 = vld [vmem:[#allocation7 + $0x30] sm:$0xff]
    %v482 = vld [vmem:[#allocation7 + $0x38] sm:$0xff]
    %v483 = vld [vmem:[#allocation7 + $0x40] sm:$0xff]
    %v484 = vld [vmem:[#allocation7 + $0x48] sm:$0xff]
    %v485 = vld [vmem:[#allocation7 + $0x50] sm:$0xff]
    %v486 = vld [vmem:[#allocation7 + $0x58] sm:$0xff]
    %v487 = vld [vmem:[#allocation7 + $0x60] sm:$0xff]
    %v488 = vld [vmem:[#allocation7 + $0x68] sm:$0xff]
    %v489 = vld [vmem:[#allocation7 + $0x70] sm:$0xff]
    %v490 = vld [vmem:[#allocation7 + $0x78] sm:$0xff]
    %v491 = vld [vmem:[#allocation7 + $0x80] sm:$0xff]
    %v492 = vld [vmem:[#allocation7 + $0x88] sm:$0xff]
    %v493 = vld [vmem:[#allocation7 + $0x90] sm:$0xff]
    %v494 = vld [vmem:[#allocation7 + $0x98] sm:$0xff]
    %v495 = vld [vmem:[#allocation7 + $0xa0] sm:$0xff]
    %v496 = vld [vmem:[#allocation7 + $0xa8] sm:$0xff]
    %v497 = vld [vmem:[#allocation7 + $0xb0] sm:$0xff]
    %v498 = vld [vmem:[#allocation7 + $0xb8] sm:$0xff]
    %v499 = vld [vmem:[#allocation7 + $0xc0] sm:$0xff]
    %v500 = vld [vmem:[#allocation7 + $0xc8] sm:$0xff]
    %v501 = vld [vmem:[#allocation7 + $0xd0] sm:$0xff]
    %v502 = vld [vmem:[#allocation7 + $0xd8] sm:$0xff]
    %v503 = vld [vmem:[#allocation7 + $0xe0] sm:$0xff]
    %v504 = vld [vmem:[#allocation7 + $0xe8] sm:$0xff]
    %v505 = vld [vmem:[#allocation7 + $0xf0] sm:$0xff]
    %v506 = vld [vmem:[#allocation7 + $0xf8] sm:$0xff]
    %v507 = vxor.u32 %v429, 2147483648
    %v508 = vxor.u32 %v443, 2147483648
    %v509 = vxor.u32 %v457, 2147483648
    %v510 = vmul.f32 %v507, 1.442695
    %v511 = vpow.pop %v510
    %v512 = vmul.f32 %v508, 1.442695
    %v513 = vpow.pop %v512
    %v514 = vmul.f32 %v509, 1.442695
    %v515 = vpow.pop %v514
    %v516 = vadd.f32 %v511, 1.0
    %v517 = vadd.f32 %v513, 1.0
    %v518 = vadd.f32 %v515, 1.0
    %v519 = vrcp.pop %v516
    %v520 = vmul.f32 %v516, %v519
    %v521 = vsub.f32 1.0, %v520
    %v522 = vmul.f32 %v519, %v521
    %v523 = vadd.f32 %v519, %v522
    %vm524 = vweird.f32 %v516
    %vm525 = vweird.f32 %v519
    %vm526 = vmor %vm524, %vm525
    %v527 = vsel %vm526, %v519, %v523
    %v528 = vand.u32 2147483647, %v516
    %vm529 = vcmp.eq.f32.partialorder %v528, 8.507059e+37
    %v530 = vand.u32 %v516, 2147483648
    %v531 = vor.u32 1.1754944e-38, %v530
    %v532 = vsel %vm529, %v531, %v527
    %v533 = vmul.f32 1.0, %v532
    %v534 = vrcp.pop %v517
    %v535 = vmul.f32 %v517, %v534
    %v536 = vsub.f32 1.0, %v535
    %v537 = vmul.f32 %v534, %v536
    %v538 = vadd.f32 %v534, %v537
    %vm539 = vweird.f32 %v517
    %vm540 = vweird.f32 %v534
    %vm541 = vmor %vm539, %vm540
    %v542 = vsel %vm541, %v534, %v538
    %v543 = vand.u32 2147483647, %v517
    %vm544 = vcmp.eq.f32.partialorder %v543, 8.507059e+37
    %v545 = vand.u32 %v517, 2147483648
    %v546 = vor.u32 1.1754944e-38, %v545
    %v547 = vsel %vm544, %v546, %v542
    %v548 = vmul.f32 1.0, %v547
    %v549 = vrcp.pop %v518
    %v550 = vmul.f32 %v518, %v549
    %v551 = vsub.f32 1.0, %v550
    %v552 = vmul.f32 %v549, %v551
    %v553 = vadd.f32 %v549, %v552
    %vm554 = vweird.f32 %v518
    %vm555 = vweird.f32 %v549
    %vm556 = vmor %vm554, %vm555
    %v557 = vsel %vm556, %v549, %v553
    %v558 = vand.u32 2147483647, %v518
    %vm559 = vcmp.eq.f32.partialorder %v558, 8.507059e+37
    %v560 = vand.u32 %v518, 2147483648
    %v561 = vor.u32 1.1754944e-38, %v560
    %v562 = vsel %vm559, %v561, %v557
    %v563 = vmul.f32 1.0, %v562
    %v564 = vtanh.pop %v471
    %v565 = vmul.f32 %v548, 0.0
    %v566 = vmul.f32 %v533, %v564
    %v567 = vadd.f32 %v565, %v566
    %v568 = vtanh.pop %v567
    %v569 = vmul.f32 %v563, %v568
    %v570 = vpack.c.bf16 %v569, %v569
    %v603 = vunpack.c.l.b16 %v475
    %v604 = vunpack.c.h.b16 %v475
    %v605 = vunpack.c.l.b16 %v476
    %v606 = vunpack.c.h.b16 %v476
    %v607 = vunpack.c.l.b16 %v477
    %v608 = vunpack.c.h.b16 %v477
    %v609 = vunpack.c.l.b16 %v478
    %v610 = vunpack.c.h.b16 %v478
    %v611 = vunpack.c.l.b16 %v479
    %v612 = vunpack.c.h.b16 %v479
    %v613 = vunpack.c.l.b16 %v480
    %v614 = vunpack.c.h.b16 %v480
    %v615 = vunpack.c.l.b16 %v481
    %v616 = vunpack.c.h.b16 %v481
    %v617 = vunpack.c.l.b16 %v482
    %v618 = vunpack.c.h.b16 %v482
    %v619 = vunpack.c.l.b16 %v483
    %v620 = vunpack.c.h.b16 %v483
    %v621 = vunpack.c.l.b16 %v484
    %v622 = vunpack.c.h.b16 %v484
    %v623 = vunpack.c.l.b16 %v485
    %v624 = vunpack.c.h.b16 %v485
    %v625 = vunpack.c.l.b16 %v486
    %v626 = vunpack.c.h.b16 %v486
    %v627 = vunpack.c.l.b16 %v487
    %v628 = vunpack.c.h.b16 %v487
    %v629 = vunpack.c.l.b16 %v488
    %v630 = vunpack.c.h.b16 %v488
    %v631 = vunpack.c.l.b16 %v489
    %v632 = vunpack.c.h.b16 %v489
    %v633 = vunpack.c.l.b16 %v490
    %v634 = vunpack.c.h.b16 %v490
    %v635 = vunpack.c.l.b16 %v491
    %v636 = vunpack.c.h.b16 %v491
    %v637 = vunpack.c.l.b16 %v492
    %v638 = vunpack.c.h.b16 %v492
    %v639 = vunpack.c.l.b16 %v493
    %v640 = vunpack.c.h.b16 %v493
    %v641 = vunpack.c.l.b16 %v494
    %v642 = vunpack.c.h.b16 %v494
    %v643 = vunpack.c.l.b16 %v495
    %v644 = vunpack.c.h.b16 %v495
    %v645 = vunpack.c.l.b16 %v496
    %v646 = vunpack.c.h.b16 %v496
    %v647 = vunpack.c.l.b16 %v497
    %v648 = vunpack.c.h.b16 %v497
    %v649 = vunpack.c.l.b16 %v498
    %v650 = vunpack.c.h.b16 %v498
    %v651 = vunpack.c.l.b16 %v499
    %v652 = vunpack.c.h.b16 %v499
    %v653 = vunpack.c.l.b16 %v500
    %v654 = vunpack.c.h.b16 %v500
    %v655 = vunpack.c.l.b16 %v501
    %v656 = vunpack.c.h.b16 %v501
    %v657 = vunpack.c.l.b16 %v502
    %v658 = vunpack.c.h.b16 %v502
    %v659 = vunpack.c.l.b16 %v503
    %v660 = vunpack.c.h.b16 %v503
    %v661 = vunpack.c.l.b16 %v504
    %v662 = vunpack.c.h.b16 %v504
    %v663 = vunpack.c.l.b16 %v505
    %v664 = vunpack.c.h.b16 %v505
    %v665 = vunpack.c.l.b16 %v506
    %v666 = vunpack.c.h.b16 %v506
    %v667 = vpack.c.b16 %v607, %v603
    %v668 = vpack.c.b16 %v608, %v604
    %v669 = vpack.c.b16 %v609, %v605
    %v670 = vpack.c.b16 %v610, %v606
    %v671 = vpack.c.b16 %v615, %v611
    %v672 = vpack.c.b16 %v616, %v612
    %v673 = vpack.c.b16 %v617, %v613
    %v674 = vpack.c.b16 %v618, %v614
    %v675 = vpack.c.b16 %v623, %v619
    %v676 = vpack.c.b16 %v624, %v620
    %v677 = vpack.c.b16 %v625, %v621
    %v678 = vpack.c.b16 %v626, %v622
    %v679 = vpack.c.b16 %v631, %v627
    %v680 = vpack.c.b16 %v632, %v628
    %v681 = vpack.c.b16 %v633, %v629
    %v682 = vpack.c.b16 %v634, %v630
    %v683 = vpack.c.b16 %v639, %v635
    %v684 = vpack.c.b16 %v640, %v636
    %v685 = vpack.c.b16 %v641, %v637
    %v686 = vpack.c.b16 %v642, %v638
    %v687 = vpack.c.b16 %v647, %v643
    %v688 = vpack.c.b16 %v648, %v644
    %v689 = vpack.c.b16 %v649, %v645
    %v690 = vpack.c.b16 %v650, %v646
    %v691 = vpack.c.b16 %v655, %v651
    %v692 = vpack.c.b16 %v656, %v652
    %v693 = vpack.c.b16 %v657, %v653
    %v694 = vpack.c.b16 %v658, %v654
    %v695 = vpack.c.b16 %v663, %v659
    %v696 = vpack.c.b16 %v664, %v660
    %v697 = vpack.c.b16 %v665, %v661
    %v698 = vpack.c.b16 %v666, %v662
    %731 = vmatpush.bf16.msra.mxu0 %v695
    %732 = vmatpush.bf16.msra.mxu0 %v691
    %733 = vmatpush.bf16.msra.mxu0 %v687
    %734 = vmatpush.bf16.msra.mxu0 %v683
    %735 = vmatpush.bf16.msra.mxu0 %v679
    %736 = vmatpush.bf16.msra.mxu0 %v675
    %737 = vmatpush.bf16.msra.mxu0 %v671
    %738 = vmatpush.bf16.msra.mxu0 %v667
    %739 = vmatmul.bf16.gmra.mxu0 %v570
    %v740 = vpop.f32.mrf.mxu0
    %v741 = vadd.f32 0.0, %v740
    %v742 = vpop.f32.mrf.mxu0
    %743 = vdwg.mxu0
    %744 = vmatpush.bf16.msra.mxu0 %v696
    %745 = vmatpush.bf16.msra.mxu0 %v692
    %746 = vmatpush.bf16.msra.mxu0 %v688
    %747 = vmatpush.bf16.msra.mxu0 %v684
    %748 = vmatpush.bf16.msra.mxu0 %v680
    %749 = vmatpush.bf16.msra.mxu0 %v676
    %750 = vmatpush.bf16.msra.mxu0 %v672
    %751 = vmatpush.bf16.msra.mxu0 %v668
    %752 = vmatmul.bf16.gmra.mxu0 %v570
    %v753 = vpop.f32.mrf.mxu0
    %v754 = vadd.f32 0.0, %v753
    %v755 = vpop.f32.mrf.mxu0
    %756 = vdwg.mxu0
    %757 = vmatpush.bf16.msra.mxu0 %v697
    %758 = vmatpush.bf16.msra.mxu0 %v693
    %759 = vmatpush.bf16.msra.mxu0 %v689
    %760 = vmatpush.bf16.msra.mxu0 %v685
    %761 = vmatpush.bf16.msra.mxu0 %v681
    %762 = vmatpush.bf16.msra.mxu0 %v677
    %763 = vmatpush.bf16.msra.mxu0 %v673
    %764 = vmatpush.bf16.msra.mxu0 %v669
    %765 = vmatmul.bf16.gmra.mxu0 %v570
    %v766 = vpop.f32.mrf.mxu0
    %v767 = vadd.f32 0.0, %v766
    %v768 = vpop.f32.mrf.mxu0
    %769 = vdwg.mxu0
    %770 = vmatpush.bf16.msra.mxu0 %v698
    %771 = vmatpush.bf16.msra.mxu0 %v694
    %772 = vmatpush.bf16.msra.mxu0 %v690
    %773 = vmatpush.bf16.msra.mxu0 %v686
    %774 = vmatpush.bf16.msra.mxu0 %v682
    %775 = vmatpush.bf16.msra.mxu0 %v678
    %776 = vmatpush.bf16.msra.mxu0 %v674
    %777 = vmatpush.bf16.msra.mxu0 %v670
    %778 = vmatmul.bf16.gmra.mxu0 %v570
    %v779 = vpop.f32.mrf.mxu0
    %v780 = vadd.f32 0.0, %v779
    %v781 = vpop.f32.mrf.mxu0
    %782 = vdwg.mxu0
    %v787 = vrot.slane %v741, 6
    %v788 = vrot.slane %v754, 6
    %v789 = vrot.slane %v767, 6
    %v790 = vrot.slane %v780, 6
    %v795 = vadd.f32 %v429, %v787
    %v796 = vadd.f32 %v443, %v788
    %v797 = vadd.f32 %v457, %v789
    %v798 = vadd.f32 %v471, %v790
    %v799 = vxor.u32 %v795, 2147483648
    %v800 = vxor.u32 %v796, 2147483648
    %v801 = vxor.u32 %v797, 2147483648
    %v802 = vmul.f32 %v799, 1.442695
    %v803 = vpow.pop %v802
    %v804 = vmul.f32 %v800, 1.442695
    %v805 = vpow.pop %v804
    %v806 = vmul.f32 %v801, 1.442695
    %v807 = vpow.pop %v806
    %v808 = vadd.f32 %v803, 1.0
    %v809 = vadd.f32 %v805, 1.0
    %v810 = vadd.f32 %v807, 1.0
    %v811 = vrcp.pop %v808
    %v812 = vmul.f32 %v808, %v811
    %v813 = vsub.f32 1.0, %v812
    %v814 = vmul.f32 %v811, %v813
    %v815 = vadd.f32 %v811, %v814
    %vm816 = vweird.f32 %v808
    %vm817 = vweird.f32 %v811
    %vm818 = vmor %vm816, %vm817
    %v819 = vsel %vm818, %v811, %v815
    %v820 = vand.u32 2147483647, %v808
    %vm821 = vcmp.eq.f32.partialorder %v820, 8.507059e+37
    %v822 = vand.u32 %v808, 2147483648
    %v823 = vor.u32 1.1754944e-38, %v822
    %v824 = vsel %vm821, %v823, %v819
    %v825 = vmul.f32 1.0, %v824
    %v826 = vrcp.pop %v809
    %v827 = vmul.f32 %v809, %v826
    %v828 = vsub.f32 1.0, %v827
    %v829 = vmul.f32 %v826, %v828
    %v830 = vadd.f32 %v826, %v829
    %vm831 = vweird.f32 %v809
    %vm832 = vweird.f32 %v826
    %vm833 = vmor %vm831, %vm832
    %v834 = vsel %vm833, %v826, %v830
    %v835 = vand.u32 2147483647, %v809
    %vm836 = vcmp.eq.f32.partialorder %v835, 8.507059e+37
    %v837 = vand.u32 %v809, 2147483648
    %v838 = vor.u32 1.1754944e-38, %v837
    %v839 = vsel %vm836, %v838, %v834
    %v840 = vmul.f32 1.0, %v839
    %v841 = vrcp.pop %v810
    %v842 = vmul.f32 %v810, %v841
    %v843 = vsub.f32 1.0, %v842
    %v844 = vmul.f32 %v841, %v843
    %v845 = vadd.f32 %v841, %v844
    %vm846 = vweird.f32 %v810
    %vm847 = vweird.f32 %v841
    %vm848 = vmor %vm846, %vm847
    %v849 = vsel %vm848, %v841, %v845
    %v850 = vand.u32 2147483647, %v810
    %vm851 = vcmp.eq.f32.partialorder %v850, 8.507059e+37
    %v852 = vand.u32 %v810, 2147483648
    %v853 = vor.u32 1.1754944e-38, %v852
    %v854 = vsel %vm851, %v853, %v849
    %v855 = vmul.f32 1.0, %v854
    %v856 = vtanh.pop %v798
    %v858 = vrot.slane %v567, 6
    %v860 = vmul.f32 %v840, %v858
    %v861 = vmul.f32 %v825, %v856
    %v862 = vadd.f32 %v860, %v861
    %v863 = vtanh.pop %v862
    %v864 = vmul.f32 %v855, %v863
    %v865 = vpack.c.bf16 %v864, %v864
    %v867 = vrot.slane %v865, 1
    %869 = vmatpush.bf16.msra.mxu0 %v695
    %870 = vmatpush.bf16.msra.mxu0 %v691
    %871 = vmatpush.bf16.msra.mxu0 %v687
    %872 = vmatpush.bf16.msra.mxu0 %v683
    %873 = vmatpush.bf16.msra.mxu0 %v679
    %874 = vmatpush.bf16.msra.mxu0 %v675
    %875 = vmatpush.bf16.msra.mxu0 %v671
    %876 = vmatpush.bf16.msra.mxu0 %v667
    %877 = vmatmul.bf16.gmra.mxu0 %v867
    %v878 = vpop.f32.mrf.mxu0
    %v879 = vadd.f32 0.0, %v878
    %v880 = vpop.f32.mrf.mxu0
    %881 = vdwg.mxu0
    %882 = vmatpush.bf16.msra.mxu0 %v696
    %883 = vmatpush.bf16.msra.mxu0 %v692
    %884 = vmatpush.bf16.msra.mxu0 %v688
    %885 = vmatpush.bf16.msra.mxu0 %v684
    %886 = vmatpush.bf16.msra.mxu0 %v680
    %887 = vmatpush.bf16.msra.mxu0 %v676
    %888 = vmatpush.bf16.msra.mxu0 %v672
    %889 = vmatpush.bf16.msra.mxu0 %v668
    %890 = vmatmul.bf16.gmra.mxu0 %v867
    %v891 = vpop.f32.mrf.mxu0
    %v892 = vadd.f32 0.0, %v891
    %v893 = vpop.f32.mrf.mxu0
    %894 = vdwg.mxu0
    %895 = vmatpush.bf16.msra.mxu0 %v697
    %896 = vmatpush.bf16.msra.mxu0 %v693
    %897 = vmatpush.bf16.msra.mxu0 %v689
    %898 = vmatpush.bf16.msra.mxu0 %v685
    %899 = vmatpush.bf16.msra.mxu0 %v681
    %900 = vmatpush.bf16.msra.mxu0 %v677
    %901 = vmatpush.bf16.msra.mxu0 %v673
    %902 = vmatpush.bf16.msra.mxu0 %v669
    %903 = vmatmul.bf16.gmra.mxu0 %v867
    %v904 = vpop.f32.mrf.mxu0
    %v905 = vadd.f32 0.0, %v904
    %v906 = vpop.f32.mrf.mxu0
    %907 = vdwg.mxu0
    %908 = vmatpush.bf16.msra.mxu0 %v698
    %909 = vmatpush.bf16.msra.mxu0 %v694
    %910 = vmatpush.bf16.msra.mxu0 %v690
    %911 = vmatpush.bf16.msra.mxu0 %v686
    %912 = vmatpush.bf16.msra.mxu0 %v682
    %913 = vmatpush.bf16.msra.mxu0 %v678
    %914 = vmatpush.bf16.msra.mxu0 %v674
    %915 = vmatpush.bf16.msra.mxu0 %v670
    %916 = vmatmul.bf16.gmra.mxu0 %v867
    %v917 = vpop.f32.mrf.mxu0
    %v918 = vadd.f32 0.0, %v917
    %v919 = vpop.f32.mrf.mxu0
    %920 = vdwg.mxu0
    %v925 = vrot.slane %v879, 4
    %v926 = vrot.slane %v892, 4
    %v927 = vrot.slane %v905, 4
    %v928 = vrot.slane %v918, 4
    %v933 = vadd.f32 %v429, %v925
    %v934 = vadd.f32 %v443, %v926
    %v935 = vadd.f32 %v457, %v927
    %v936 = vadd.f32 %v471, %v928
    %v937 = vxor.u32 %v933, 2147483648
    %v938 = vxor.u32 %v934, 2147483648
    %v939 = vxor.u32 %v935, 2147483648
    %v940 = vmul.f32 %v937, 1.442695
    %v941 = vpow.pop %v940
    %v942 = vmul.f32 %v938, 1.442695
    %v943 = vpow.pop %v942
    %v944 = vmul.f32 %v939, 1.442695
    %v945 = vpow.pop %v944
    %v946 = vadd.f32 %v941, 1.0
    %v947 = vadd.f32 %v943, 1.0
    %v948 = vadd.f32 %v945, 1.0
    %v949 = vrcp.pop %v946
    %v950 = vmul.f32 %v946, %v949
    %v951 = vsub.f32 1.0, %v950
    %v952 = vmul.f32 %v949, %v951
    %v953 = vadd.f32 %v949, %v952
    %vm954 = vweird.f32 %v946
    %vm955 = vweird.f32 %v949
    %vm956 = vmor %vm954, %vm955
    %v957 = vsel %vm956, %v949, %v953
    %v958 = vand.u32 2147483647, %v946
    %vm959 = vcmp.eq.f32.partialorder %v958, 8.507059e+37
    %v960 = vand.u32 %v946, 2147483648
    %v961 = vor.u32 1.1754944e-38, %v960
    %v962 = vsel %vm959, %v961, %v957
    %v963 = vmul.f32 1.0, %v962
    %v964 = vrcp.pop %v947
    %v965 = vmul.f32 %v947, %v964
    %v966 = vsub.f32 1.0, %v965
    %v967 = vmul.f32 %v964, %v966
    %v968 = vadd.f32 %v964, %v967
    %vm969 = vweird.f32 %v947
    %vm970 = vweird.f32 %v964
    %vm971 = vmor %vm969, %vm970
    %v972 = vsel %vm971, %v964, %v968
    %v973 = vand.u32 2147483647, %v947
    %vm974 = vcmp.eq.f32.partialorder %v973, 8.507059e+37
    %v975 = vand.u32 %v947, 2147483648
    %v976 = vor.u32 1.1754944e-38, %v975
    %v977 = vsel %vm974, %v976, %v972
    %v978 = vmul.f32 1.0, %v977
    %v979 = vrcp.pop %v948
    %v980 = vmul.f32 %v948, %v979
    %v981 = vsub.f32 1.0, %v980
    %v982 = vmul.f32 %v979, %v981
    %v983 = vadd.f32 %v979, %v982
    %vm984 = vweird.f32 %v948
    %vm985 = vweird.f32 %v979
    %vm986 = vmor %vm984, %vm985
    %v987 = vsel %vm986, %v979, %v983
    %v988 = vand.u32 2147483647, %v948
    %vm989 = vcmp.eq.f32.partialorder %v988, 8.507059e+37
    %v990 = vand.u32 %v948, 2147483648
    %v991 = vor.u32 1.1754944e-38, %v990
    %v992 = vsel %vm989, %v991, %v987
    %v993 = vmul.f32 1.0, %v992
    %v994 = vtanh.pop %v936
    %v996 = vrot.slane %v862, 6
    %v998 = vmul.f32 %v978, %v996
    %v999 = vmul.f32 %v963, %v994
    %v1000 = vadd.f32 %v998, %v999
    %v1001 = vtanh.pop %v1000
    %v1002 = vmul.f32 %v993, %v1001
    %v1003 = vpack.c.bf16 %v1002, %v1002
    %v1005 = vrot.slane %v1003, 2
    %1007 = vmatpush.bf16.msra.mxu0 %v695
    %1008 = vmatpush.bf16.msra.mxu0 %v691
    %1009 = vmatpush.bf16.msra.mxu0 %v687
    %1010 = vmatpush.bf16.msra.mxu0 %v683
    %1011 = vmatpush.bf16.msra.mxu0 %v679
    %1012 = vmatpush.bf16.msra.mxu0 %v675
    %1013 = vmatpush.bf16.msra.mxu0 %v671
    %1014 = vmatpush.bf16.msra.mxu0 %v667
    %1015 = vmatmul.bf16.gmra.mxu0 %v1005
    %v1016 = vpop.f32.mrf.mxu0
    %v1017 = vadd.f32 0.0, %v1016
    %v1018 = vpop.f32.mrf.mxu0
    %1019 = vdwg.mxu0
    %1020 = vmatpush.bf16.msra.mxu0 %v696
    %1021 = vmatpush.bf16.msra.mxu0 %v692
    %1022 = vmatpush.bf16.msra.mxu0 %v688
    %1023 = vmatpush.bf16.msra.mxu0 %v684
    %1024 = vmatpush.bf16.msra.mxu0 %v680
    %1025 = vmatpush.bf16.msra.mxu0 %v676
    %1026 = vmatpush.bf16.msra.mxu0 %v672
    %1027 = vmatpush.bf16.msra.mxu0 %v668
    %1028 = vmatmul.bf16.gmra.mxu0 %v1005
    %v1029 = vpop.f32.mrf.mxu0
    %v1030 = vadd.f32 0.0, %v1029
    %v1031 = vpop.f32.mrf.mxu0
    %1032 = vdwg.mxu0
    %1033 = vmatpush.bf16.msra.mxu0 %v697
    %1034 = vmatpush.bf16.msra.mxu0 %v693
    %1035 = vmatpush.bf16.msra.mxu0 %v689
    %1036 = vmatpush.bf16.msra.mxu0 %v685
    %1037 = vmatpush.bf16.msra.mxu0 %v681
    %1038 = vmatpush.bf16.msra.mxu0 %v677
    %1039 = vmatpush.bf16.msra.mxu0 %v673
    %1040 = vmatpush.bf16.msra.mxu0 %v669
    %1041 = vmatmul.bf16.gmra.mxu0 %v1005
    %v1042 = vpop.f32.mrf.mxu0
    %v1043 = vadd.f32 0.0, %v1042
    %v1044 = vpop.f32.mrf.mxu0
    %1045 = vdwg.mxu0
    %1046 = vmatpush.bf16.msra.mxu0 %v698
    %1047 = vmatpush.bf16.msra.mxu0 %v694
    %1048 = vmatpush.bf16.msra.mxu0 %v690
    %1049 = vmatpush.bf16.msra.mxu0 %v686
    %1050 = vmatpush.bf16.msra.mxu0 %v682
    %1051 = vmatpush.bf16.msra.mxu0 %v678
    %1052 = vmatpush.bf16.msra.mxu0 %v674
    %1053 = vmatpush.bf16.msra.mxu0 %v670
    %1054 = vmatmul.bf16.gmra.mxu0 %v1005
    %v1055 = vpop.f32.mrf.mxu0
    %v1056 = vadd.f32 0.0, %v1055
    %v1057 = vpop.f32.mrf.mxu0
    %1058 = vdwg.mxu0
    %v1063 = vrot.slane %v1017, 2
    %v1064 = vrot.slane %v1030, 2
    %v1065 = vrot.slane %v1043, 2
    %v1066 = vrot.slane %v1056, 2
    %v1071 = vadd.f32 %v429, %v1063
    %v1072 = vadd.f32 %v443, %v1064
    %v1073 = vadd.f32 %v457, %v1065
    %v1074 = vadd.f32 %v471, %v1066
    %v1075 = vxor.u32 %v1071, 2147483648
    %v1076 = vxor.u32 %v1072, 2147483648
    %v1077 = vxor.u32 %v1073, 2147483648
    %v1078 = vmul.f32 %v1075, 1.442695
    %v1079 = vpow.pop %v1078
    %v1080 = vmul.f32 %v1076, 1.442695
    %v1081 = vpow.pop %v1080
    %v1082 = vmul.f32 %v1077, 1.442695
    %v1083 = vpow.pop %v1082
    %v1084 = vadd.f32 %v1079, 1.0
    %v1085 = vadd.f32 %v1081, 1.0
    %v1086 = vadd.f32 %v1083, 1.0
    %v1087 = vrcp.pop %v1084
    %v1088 = vmul.f32 %v1084, %v1087
    %v1089 = vsub.f32 1.0, %v1088
    %v1090 = vmul.f32 %v1087, %v1089
    %v1091 = vadd.f32 %v1087, %v1090
    %vm1092 = vweird.f32 %v1084
    %vm1093 = vweird.f32 %v1087
    %vm1094 = vmor %vm1092, %vm1093
    %v1095 = vsel %vm1094, %v1087, %v1091
    %v1096 = vand.u32 2147483647, %v1084
    %vm1097 = vcmp.eq.f32.partialorder %v1096, 8.507059e+37
    %v1098 = vand.u32 %v1084, 2147483648
    %v1099 = vor.u32 1.1754944e-38, %v1098
    %v1100 = vsel %vm1097, %v1099, %v1095
    %v1101 = vmul.f32 1.0, %v1100
    %v1102 = vrcp.pop %v1085
    %v1103 = vmul.f32 %v1085, %v1102
    %v1104 = vsub.f32 1.0, %v1103
    %v1105 = vmul.f32 %v1102, %v1104
    %v1106 = vadd.f32 %v1102, %v1105
    %vm1107 = vweird.f32 %v1085
    %vm1108 = vweird.f32 %v1102
    %vm1109 = vmor %vm1107, %vm1108
    %v1110 = vsel %vm1109, %v1102, %v1106
    %v1111 = vand.u32 2147483647, %v1085
    %vm1112 = vcmp.eq.f32.partialorder %v1111, 8.507059e+37
    %v1113 = vand.u32 %v1085, 2147483648
    %v1114 = vor.u32 1.1754944e-38, %v1113
    %v1115 = vsel %vm1112, %v1114, %v1110
    %v1116 = vmul.f32 1.0, %v1115
    %v1117 = vrcp.pop %v1086
    %v1118 = vmul.f32 %v1086, %v1117
    %v1119 = vsub.f32 1.0, %v1118
    %v1120 = vmul.f32 %v1117, %v1119
    %v1121 = vadd.f32 %v1117, %v1120
    %vm1122 = vweird.f32 %v1086
    %vm1123 = vweird.f32 %v1117
    %vm1124 = vmor %vm1122, %vm1123
    %v1125 = vsel %vm1124, %v1117, %v1121
    %v1126 = vand.u32 2147483647, %v1086
    %vm1127 = vcmp.eq.f32.partialorder %v1126, 8.507059e+37
    %v1128 = vand.u32 %v1086, 2147483648
    %v1129 = vor.u32 1.1754944e-38, %v1128
    %v1130 = vsel %vm1127, %v1129, %v1125
    %v1131 = vmul.f32 1.0, %v1130
    %v1132 = vtanh.pop %v1074
    %v1134 = vrot.slane %v1000, 6
    %v1136 = vmul.f32 %v1116, %v1134
    %v1137 = vmul.f32 %v1101, %v1132
    %v1138 = vadd.f32 %v1136, %v1137
    %v1139 = vtanh.pop %v1138
    %v1140 = vmul.f32 %v1131, %v1139
    %v1141 = vpack.c.bf16 %v1140, %v1140
    %v1143 = vrot.slane %v1141, 3
    %1145 = vmatpush.bf16.msra.mxu0 %v695
    %1146 = vmatpush.bf16.msra.mxu0 %v691
    %1147 = vmatpush.bf16.msra.mxu0 %v687
    %1148 = vmatpush.bf16.msra.mxu0 %v683
    %1149 = vmatpush.bf16.msra.mxu0 %v679
    %1150 = vmatpush.bf16.msra.mxu0 %v675
    %1151 = vmatpush.bf16.msra.mxu0 %v671
    %1152 = vmatpush.bf16.msra.mxu0 %v667
    %1153 = vmatmul.bf16.gmra.mxu0 %v1143
    %v1154 = vpop.f32.mrf.mxu0
    %v1155 = vadd.f32 0.0, %v1154
    %v1156 = vpop.f32.mrf.mxu0
    %1157 = vdwg.mxu0
    %1158 = vmatpush.bf16.msra.mxu0 %v696
    %1159 = vmatpush.bf16.msra.mxu0 %v692
    %1160 = vmatpush.bf16.msra.mxu0 %v688
    %1161 = vmatpush.bf16.msra.mxu0 %v684
    %1162 = vmatpush.bf16.msra.mxu0 %v680
    %1163 = vmatpush.bf16.msra.mxu0 %v676
    %1164 = vmatpush.bf16.msra.mxu0 %v672
    %1165 = vmatpush.bf16.msra.mxu0 %v668
    %1166 = vmatmul.bf16.gmra.mxu0 %v1143
    %v1167 = vpop.f32.mrf.mxu0
    %v1168 = vadd.f32 0.0, %v1167
    %v1169 = vpop.f32.mrf.mxu0
    %1170 = vdwg.mxu0
    %1171 = vmatpush.bf16.msra.mxu0 %v697
    %1172 = vmatpush.bf16.msra.mxu0 %v693
    %1173 = vmatpush.bf16.msra.mxu0 %v689
    %1174 = vmatpush.bf16.msra.mxu0 %v685
    %1175 = vmatpush.bf16.msra.mxu0 %v681
    %1176 = vmatpush.bf16.msra.mxu0 %v677
    %1177 = vmatpush.bf16.msra.mxu0 %v673
    %1178 = vmatpush.bf16.msra.mxu0 %v669
    %1179 = vmatmul.bf16.gmra.mxu0 %v1143
    %v1180 = vpop.f32.mrf.mxu0
    %v1181 = vadd.f32 0.0, %v1180
    %v1182 = vpop.f32.mrf.mxu0
    %1183 = vdwg.mxu0
    %1184 = vmatpush.bf16.msra.mxu0 %v698
    %1185 = vmatpush.bf16.msra.mxu0 %v694
    %1186 = vmatpush.bf16.msra.mxu0 %v690
    %1187 = vmatpush.bf16.msra.mxu0 %v686
    %1188 = vmatpush.bf16.msra.mxu0 %v682
    %1189 = vmatpush.bf16.msra.mxu0 %v678
    %1190 = vmatpush.bf16.msra.mxu0 %v674
    %1191 = vmatpush.bf16.msra.mxu0 %v670
    %1192 = vmatmul.bf16.gmra.mxu0 %v1143
    %v1193 = vpop.f32.mrf.mxu0
    %v1194 = vadd.f32 0.0, %v1193
    %v1195 = vpop.f32.mrf.mxu0
    %1196 = vdwg.mxu0
    %v1197 = vadd.f32 %v431, %v1155
    %v1198 = vadd.f32 %v445, %v1168
    %v1199 = vadd.f32 %v459, %v1181
    %v1200 = vadd.f32 %v473, %v1194
    %v1201 = vxor.u32 %v1197, 2147483648
    %v1202 = vxor.u32 %v1198, 2147483648
    %v1203 = vxor.u32 %v1199, 2147483648
    %v1204 = vmul.f32 %v1201, 1.442695
    %v1205 = vpow.pop %v1204
    %v1206 = vmul.f32 %v1202, 1.442695
    %v1207 = vpow.pop %v1206
    %v1208 = vmul.f32 %v1203, 1.442695
    %v1209 = vpow.pop %v1208
    %v1210 = vadd.f32 %v1205, 1.0
    %v1211 = vadd.f32 %v1207, 1.0
    %v1212 = vadd.f32 %v1209, 1.0
    %v1213 = vrcp.pop %v1210
    %v1214 = vmul.f32 %v1210, %v1213
    %v1215 = vsub.f32 1.0, %v1214
    %v1216 = vmul.f32 %v1213, %v1215
    %v1217 = vadd.f32 %v1213, %v1216
    %vm1218 = vweird.f32 %v1210
    %vm1219 = vweird.f32 %v1213
    %vm1220 = vmor %vm1218, %vm1219
    %v1221 = vsel %vm1220, %v1213, %v1217
    %v1222 = vand.u32 2147483647, %v1210
    %vm1223 = vcmp.eq.f32.partialorder %v1222, 8.507059e+37
    %v1224 = vand.u32 %v1210, 2147483648
    %v1225 = vor.u32 1.1754944e-38, %v1224
    %v1226 = vsel %vm1223, %v1225, %v1221
    %v1227 = vmul.f32 1.0, %v1226
    %v1228 = vrcp.pop %v1211
    %v1229 = vmul.f32 %v1211, %v1228
    %v1230 = vsub.f32 1.0, %v1229
    %v1231 = vmul.f32 %v1228, %v1230
    %v1232 = vadd.f32 %v1228, %v1231
    %vm1233 = vweird.f32 %v1211
    %vm1234 = vweird.f32 %v1228
    %vm1235 = vmor %vm1233, %vm1234
    %v1236 = vsel %vm1235, %v1228, %v1232
    %v1237 = vand.u32 2147483647, %v1211
    %vm1238 = vcmp.eq.f32.partialorder %v1237, 8.507059e+37
    %v1239 = vand.u32 %v1211, 2147483648
    %v1240 = vor.u32 1.1754944e-38, %v1239
    %v1241 = vsel %vm1238, %v1240, %v1236
    %v1242 = vmul.f32 1.0, %v1241
    %v1243 = vrcp.pop %v1212
    %v1244 = vmul.f32 %v1212, %v1243
    %v1245 = vsub.f32 1.0, %v1244
    %v1246 = vmul.f32 %v1243, %v1245
    %v1247 = vadd.f32 %v1243, %v1246
    %vm1248 = vweird.f32 %v1212
    %vm1249 = vweird.f32 %v1243
    %vm1250 = vmor %vm1248, %vm1249
    %v1251 = vsel %vm1250, %v1243, %v1247
    %v1252 = vand.u32 2147483647, %v1212
    %vm1253 = vcmp.eq.f32.partialorder %v1252, 8.507059e+37
    %v1254 = vand.u32 %v1212, 2147483648
    %v1255 = vor.u32 1.1754944e-38, %v1254
    %v1256 = vsel %vm1253, %v1255, %v1251
    %v1257 = vmul.f32 1.0, %v1256
    %v1258 = vtanh.pop %v1200
    %v1260 = vrot.slane %v1138, 6
    %v1262 = vmul.f32 %v1242, %v1260
    %v1263 = vmul.f32 %v1227, %v1258
    %v1264 = vadd.f32 %v1262, %v1263
    %v1265 = vtanh.pop %v1264
    %v1266 = vmul.f32 %v1257, %v1265
    %v1267 = vpack.c.bf16 %v1266, %v1266
    %1268 = vmatpush.bf16.msra.mxu0 %v695
    %1269 = vmatpush.bf16.msra.mxu0 %v691
    %1270 = vmatpush.bf16.msra.mxu0 %v687
    %1271 = vmatpush.bf16.msra.mxu0 %v683
    %1272 = vmatpush.bf16.msra.mxu0 %v679
    %1273 = vmatpush.bf16.msra.mxu0 %v675
    %1274 = vmatpush.bf16.msra.mxu0 %v671
    %1275 = vmatpush.bf16.msra.mxu0 %v667
    %1276 = vmatmul.bf16.gmra.mxu0 %v1267
    %v1277 = vpop.f32.mrf.mxu0
    %v1278 = vadd.f32 0.0, %v1277
    %v1279 = vpop.f32.mrf.mxu0
    %1280 = vdwg.mxu0
    %1281 = vmatpush.bf16.msra.mxu0 %v696
    %1282 = vmatpush.bf16.msra.mxu0 %v692
    %1283 = vmatpush.bf16.msra.mxu0 %v688
    %1284 = vmatpush.bf16.msra.mxu0 %v684
    %1285 = vmatpush.bf16.msra.mxu0 %v680
    %1286 = vmatpush.bf16.msra.mxu0 %v676
    %1287 = vmatpush.bf16.msra.mxu0 %v672
    %1288 = vmatpush.bf16.msra.mxu0 %v668
    %1289 = vmatmul.bf16.gmra.mxu0 %v1267
    %v1290 = vpop.f32.mrf.mxu0
    %v1291 = vadd.f32 0.0, %v1290
    %v1292 = vpop.f32.mrf.mxu0
    %1293 = vdwg.mxu0
    %1294 = vmatpush.bf16.msra.mxu0 %v697
    %1295 = vmatpush.bf16.msra.mxu0 %v693
    %1296 = vmatpush.bf16.msra.mxu0 %v689
    %1297 = vmatpush.bf16.msra.mxu0 %v685
    %1298 = vmatpush.bf16.msra.mxu0 %v681
    %1299 = vmatpush.bf16.msra.mxu0 %v677
    %1300 = vmatpush.bf16.msra.mxu0 %v673
    %1301 = vmatpush.bf16.msra.mxu0 %v669
    %1302 = vmatmul.bf16.gmra.mxu0 %v1267
    %v1303 = vpop.f32.mrf.mxu0
    %v1304 = vadd.f32 0.0, %v1303
    %v1305 = vpop.f32.mrf.mxu0
    %1306 = vdwg.mxu0
    %1307 = vmatpush.bf16.msra.mxu0 %v698
    %1308 = vmatpush.bf16.msra.mxu0 %v694
    %1309 = vmatpush.bf16.msra.mxu0 %v690
    %1310 = vmatpush.bf16.msra.mxu0 %v686
    %1311 = vmatpush.bf16.msra.mxu0 %v682
    %1312 = vmatpush.bf16.msra.mxu0 %v678
    %1313 = vmatpush.bf16.msra.mxu0 %v674
    %1314 = vmatpush.bf16.msra.mxu0 %v670
    %1315 = vmatmul.bf16.gmra.mxu0 %v1267
    %v1316 = vpop.f32.mrf.mxu0
    %v1317 = vadd.f32 0.0, %v1316
    %v1318 = vpop.f32.mrf.mxu0
    %1319 = vdwg.mxu0
    %v1324 = vrot.slane %v1278, 6
    %v1325 = vrot.slane %v1291, 6
    %v1326 = vrot.slane %v1304, 6
    %v1327 = vrot.slane %v1317, 6
    %v1332 = vadd.f32 %v431, %v1324
    %v1333 = vadd.f32 %v445, %v1325
    %v1334 = vadd.f32 %v459, %v1326
    %v1335 = vadd.f32 %v473, %v1327
    %v1336 = vxor.u32 %v1332, 2147483648
    %v1337 = vxor.u32 %v1333, 2147483648
    %v1338 = vxor.u32 %v1334, 2147483648
    %v1339 = vmul.f32 %v1336, 1.442695
    %v1340 = vpow.pop %v1339
    %v1341 = vmul.f32 %v1337, 1.442695
    %v1342 = vpow.pop %v1341
    %v1343 = vmul.f32 %v1338, 1.442695
    %v1344 = vpow.pop %v1343
    %v1345 = vadd.f32 %v1340, 1.0
    %v1346 = vadd.f32 %v1342, 1.0
    %v1347 = vadd.f32 %v1344, 1.0
    %v1348 = vrcp.pop %v1345
    %v1349 = vmul.f32 %v1345, %v1348
    %v1350 = vsub.f32 1.0, %v1349
    %v1351 = vmul.f32 %v1348, %v1350
    %v1352 = vadd.f32 %v1348, %v1351
    %vm1353 = vweird.f32 %v1345
    %vm1354 = vweird.f32 %v1348
    %vm1355 = vmor %vm1353, %vm1354
    %v1356 = vsel %vm1355, %v1348, %v1352
    %v1357 = vand.u32 2147483647, %v1345
    %vm1358 = vcmp.eq.f32.partialorder %v1357, 8.507059e+37
    %v1359 = vand.u32 %v1345, 2147483648
    %v1360 = vor.u32 1.1754944e-38, %v1359
    %v1361 = vsel %vm1358, %v1360, %v1356
    %v1362 = vmul.f32 1.0, %v1361
    %v1363 = vrcp.pop %v1346
    %v1364 = vmul.f32 %v1346, %v1363
    %v1365 = vsub.f32 1.0, %v1364
    %v1366 = vmul.f32 %v1363, %v1365
    %v1367 = vadd.f32 %v1363, %v1366
    %vm1368 = vweird.f32 %v1346
    %vm1369 = vweird.f32 %v1363
    %vm1370 = vmor %vm1368, %vm1369
    %v1371 = vsel %vm1370, %v1363, %v1367
    %v1372 = vand.u32 2147483647, %v1346
    %vm1373 = vcmp.eq.f32.partialorder %v1372, 8.507059e+37
    %v1374 = vand.u32 %v1346, 2147483648
    %v1375 = vor.u32 1.1754944e-38, %v1374
    %v1376 = vsel %vm1373, %v1375, %v1371
    %v1377 = vmul.f32 1.0, %v1376
    %v1378 = vrcp.pop %v1347
    %v1379 = vmul.f32 %v1347, %v1378
    %v1380 = vsub.f32 1.0, %v1379
    %v1381 = vmul.f32 %v1378, %v1380
    %v1382 = vadd.f32 %v1378, %v1381
    %vm1383 = vweird.f32 %v1347
    %vm1384 = vweird.f32 %v1378
    %vm1385 = vmor %vm1383, %vm1384
    %v1386 = vsel %vm1385, %v1378, %v1382
    %v1387 = vand.u32 2147483647, %v1347
    %vm1388 = vcmp.eq.f32.partialorder %v1387, 8.507059e+37
    %v1389 = vand.u32 %v1347, 2147483648
    %v1390 = vor.u32 1.1754944e-38, %v1389
    %v1391 = vsel %vm1388, %v1390, %v1386
    %v1392 = vmul.f32 1.0, %v1391
    %v1393 = vtanh.pop %v1335
    %v1395 = vrot.slane %v1264, 6
    %v1397 = vmul.f32 %v1377, %v1395
    %v1398 = vmul.f32 %v1362, %v1393
    %v1399 = vadd.f32 %v1397, %v1398
    %v1400 = vtanh.pop %v1399
    %v1401 = vmul.f32 %v1392, %v1400
    %v1402 = vpack.c.bf16 %v1401, %v1401
    %v1404 = vrot.slane %v1402, 1
    %1406 = vmatpush.bf16.msra.mxu0 %v695
    %1407 = vmatpush.bf16.msra.mxu0 %v691
    %1408 = vmatpush.bf16.msra.mxu0 %v687
    %1409 = vmatpush.bf16.msra.mxu0 %v683
    %1410 = vmatpush.bf16.msra.mxu0 %v679
    %1411 = vmatpush.bf16.msra.mxu0 %v675
    %1412 = vmatpush.bf16.msra.mxu0 %v671
    %1413 = vmatpush.bf16.msra.mxu0 %v667
    %1414 = vmatmul.bf16.gmra.mxu0 %v1404
    %v1415 = vpop.f32.mrf.mxu0
    %v1416 = vadd.f32 0.0, %v1415
    %v1417 = vpop.f32.mrf.mxu0
    %1418 = vdwg.mxu0
    %1419 = vmatpush.bf16.msra.mxu0 %v696
    %1420 = vmatpush.bf16.msra.mxu0 %v692
    %1421 = vmatpush.bf16.msra.mxu0 %v688
    %1422 = vmatpush.bf16.msra.mxu0 %v684
    %1423 = vmatpush.bf16.msra.mxu0 %v680
    %1424 = vmatpush.bf16.msra.mxu0 %v676
    %1425 = vmatpush.bf16.msra.mxu0 %v672
    %1426 = vmatpush.bf16.msra.mxu0 %v668
    %1427 = vmatmul.bf16.gmra.mxu0 %v1404
    %v1428 = vpop.f32.mrf.mxu0
    %v1429 = vadd.f32 0.0, %v1428
    %v1430 = vpop.f32.mrf.mxu0
    %1431 = vdwg.mxu0
    %1432 = vmatpush.bf16.msra.mxu0 %v697
    %1433 = vmatpush.bf16.msra.mxu0 %v693
    %1434 = vmatpush.bf16.msra.mxu0 %v689
    %1435 = vmatpush.bf16.msra.mxu0 %v685
    %1436 = vmatpush.bf16.msra.mxu0 %v681
    %1437 = vmatpush.bf16.msra.mxu0 %v677
    %1438 = vmatpush.bf16.msra.mxu0 %v673
    %1439 = vmatpush.bf16.msra.mxu0 %v669
    %1440 = vmatmul.bf16.gmra.mxu0 %v1404
    %v1441 = vpop.f32.mrf.mxu0
    %v1442 = vadd.f32 0.0, %v1441
    %v1443 = vpop.f32.mrf.mxu0
    %1444 = vdwg.mxu0
    %1445 = vmatpush.bf16.msra.mxu0 %v698
    %1446 = vmatpush.bf16.msra.mxu0 %v694
    %1447 = vmatpush.bf16.msra.mxu0 %v690
    %1448 = vmatpush.bf16.msra.mxu0 %v686
    %1449 = vmatpush.bf16.msra.mxu0 %v682
    %1450 = vmatpush.bf16.msra.mxu0 %v678
    %1451 = vmatpush.bf16.msra.mxu0 %v674
    %1452 = vmatpush.bf16.msra.mxu0 %v670
    %1453 = vmatmul.bf16.gmra.mxu0 %v1404
    %v1454 = vpop.f32.mrf.mxu0
    %v1455 = vadd.f32 0.0, %v1454
    %v1456 = vpop.f32.mrf.mxu0
    %1457 = vdwg.mxu0
    %v1462 = vrot.slane %v1416, 4
    %v1463 = vrot.slane %v1429, 4
    %v1464 = vrot.slane %v1442, 4
    %v1465 = vrot.slane %v1455, 4
    %v1470 = vadd.f32 %v431, %v1462
    %v1471 = vadd.f32 %v445, %v1463
    %v1472 = vadd.f32 %v459, %v1464
    %v1473 = vadd.f32 %v473, %v1465
    %v1474 = vxor.u32 %v1470, 2147483648
    %v1475 = vxor.u32 %v1471, 2147483648
    %v1476 = vxor.u32 %v1472, 2147483648
    %v1477 = vmul.f32 %v1474, 1.442695
    %v1478 = vpow.pop %v1477
    %v1479 = vmul.f32 %v1475, 1.442695
    %v1480 = vpow.pop %v1479
    %v1481 = vmul.f32 %v1476, 1.442695
    %v1482 = vpow.pop %v1481
    %v1483 = vadd.f32 %v1478, 1.0
    %v1484 = vadd.f32 %v1480, 1.0
    %v1485 = vadd.f32 %v1482, 1.0
    %v1486 = vrcp.pop %v1483
    %v1487 = vmul.f32 %v1483, %v1486
    %v1488 = vsub.f32 1.0, %v1487
    %v1489 = vmul.f32 %v1486, %v1488
    %v1490 = vadd.f32 %v1486, %v1489
    %vm1491 = vweird.f32 %v1483
    %vm1492 = vweird.f32 %v1486
    %vm1493 = vmor %vm1491, %vm1492
    %v1494 = vsel %vm1493, %v1486, %v1490
    %v1495 = vand.u32 2147483647, %v1483
    %vm1496 = vcmp.eq.f32.partialorder %v1495, 8.507059e+37
    %v1497 = vand.u32 %v1483, 2147483648
    %v1498 = vor.u32 1.1754944e-38, %v1497
    %v1499 = vsel %vm1496, %v1498, %v1494
    %v1500 = vmul.f32 1.0, %v1499
    %v1501 = vrcp.pop %v1484
    %v1502 = vmul.f32 %v1484, %v1501
    %v1503 = vsub.f32 1.0, %v1502
    %v1504 = vmul.f32 %v1501, %v1503
    %v1505 = vadd.f32 %v1501, %v1504
    %vm1506 = vweird.f32 %v1484
    %vm1507 = vweird.f32 %v1501
    %vm1508 = vmor %vm1506, %vm1507
    %v1509 = vsel %vm1508, %v1501, %v1505
    %v1510 = vand.u32 2147483647, %v1484
    %vm1511 = vcmp.eq.f32.partialorder %v1510, 8.507059e+37
    %v1512 = vand.u32 %v1484, 2147483648
    %v1513 = vor.u32 1.1754944e-38, %v1512
    %v1514 = vsel %vm1511, %v1513, %v1509
    %v1515 = vmul.f32 1.0, %v1514
    %v1516 = vrcp.pop %v1485
    %v1517 = vmul.f32 %v1485, %v1516
    %v1518 = vsub.f32 1.0, %v1517
    %v1519 = vmul.f32 %v1516, %v1518
    %v1520 = vadd.f32 %v1516, %v1519
    %vm1521 = vweird.f32 %v1485
    %vm1522 = vweird.f32 %v1516
    %vm1523 = vmor %vm1521, %vm1522
    %v1524 = vsel %vm1523, %v1516, %v1520
    %v1525 = vand.u32 2147483647, %v1485
    %vm1526 = vcmp.eq.f32.partialorder %v1525, 8.507059e+37
    %v1527 = vand.u32 %v1485, 2147483648
    %v1528 = vor.u32 1.1754944e-38, %v1527
    %v1529 = vsel %vm1526, %v1528, %v1524
    %v1530 = vmul.f32 1.0, %v1529
    %v1531 = vtanh.pop %v1473
    %v1533 = vrot.slane %v1399, 6
    %v1535 = vmul.f32 %v1515, %v1533
    %v1536 = vmul.f32 %v1500, %v1531
    %v1537 = vadd.f32 %v1535, %v1536
    %v1538 = vtanh.pop %v1537
    %v1539 = vmul.f32 %v1530, %v1538
    %v1540 = vpack.c.bf16 %v1539, %v1539
    %v1542 = vrot.slane %v1540, 2
    %1544 = vmatpush.bf16.msra.mxu0 %v695
    %1545 = vmatpush.bf16.msra.mxu0 %v691
    %1546 = vmatpush.bf16.msra.mxu0 %v687
    %1547 = vmatpush.bf16.msra.mxu0 %v683
    %1548 = vmatpush.bf16.msra.mxu0 %v679
    %1549 = vmatpush.bf16.msra.mxu0 %v675
    %1550 = vmatpush.bf16.msra.mxu0 %v671
    %1551 = vmatpush.bf16.msra.mxu0 %v667
    %1552 = vmatmul.bf16.gmra.mxu0 %v1542
    %v1553 = vpop.f32.mrf.mxu0
    %v1554 = vadd.f32 0.0, %v1553
    %v1555 = vpop.f32.mrf.mxu0
    %1556 = vdwg.mxu0
    %1557 = vmatpush.bf16.msra.mxu0 %v696
    %1558 = vmatpush.bf16.msra.mxu0 %v692
    %1559 = vmatpush.bf16.msra.mxu0 %v688
    %1560 = vmatpush.bf16.msra.mxu0 %v684
    %1561 = vmatpush.bf16.msra.mxu0 %v680
    %1562 = vmatpush.bf16.msra.mxu0 %v676
    %1563 = vmatpush.bf16.msra.mxu0 %v672
    %1564 = vmatpush.bf16.msra.mxu0 %v668
    %1565 = vmatmul.bf16.gmra.mxu0 %v1542
    %v1566 = vpop.f32.mrf.mxu0
    %v1567 = vadd.f32 0.0, %v1566
    %v1568 = vpop.f32.mrf.mxu0
    %1569 = vdwg.mxu0
    %1570 = vmatpush.bf16.msra.mxu0 %v697
    %1571 = vmatpush.bf16.msra.mxu0 %v693
    %1572 = vmatpush.bf16.msra.mxu0 %v689
    %1573 = vmatpush.bf16.msra.mxu0 %v685
    %1574 = vmatpush.bf16.msra.mxu0 %v681
    %1575 = vmatpush.bf16.msra.mxu0 %v677
    %1576 = vmatpush.bf16.msra.mxu0 %v673
    %1577 = vmatpush.bf16.msra.mxu0 %v669
    %1578 = vmatmul.bf16.gmra.mxu0 %v1542
    %v1579 = vpop.f32.mrf.mxu0
    %v1580 = vadd.f32 0.0, %v1579
    %v1581 = vpop.f32.mrf.mxu0
    %1582 = vdwg.mxu0
    %1583 = vmatpush.bf16.msra.mxu0 %v698
    %1584 = vmatpush.bf16.msra.mxu0 %v694
    %1585 = vmatpush.bf16.msra.mxu0 %v690
    %1586 = vmatpush.bf16.msra.mxu0 %v686
    %1587 = vmatpush.bf16.msra.mxu0 %v682
    %1588 = vmatpush.bf16.msra.mxu0 %v678
    %1589 = vmatpush.bf16.msra.mxu0 %v674
    %1590 = vmatpush.bf16.msra.mxu0 %v670
    %1591 = vmatmul.bf16.gmra.mxu0 %v1542
    %v1592 = vpop.f32.mrf.mxu0
    %v1593 = vadd.f32 0.0, %v1592
    %v1594 = vpop.f32.mrf.mxu0
    %1595 = vdwg.mxu0
    %v1600 = vrot.slane %v1554, 2
    %v1601 = vrot.slane %v1567, 2
    %v1602 = vrot.slane %v1580, 2
    %v1603 = vrot.slane %v1593, 2
    %v1608 = vadd.f32 %v431, %v1600
    %v1609 = vadd.f32 %v445, %v1601
    %v1610 = vadd.f32 %v459, %v1602
    %v1611 = vadd.f32 %v473, %v1603
    %v1612 = vxor.u32 %v1608, 2147483648
    %v1613 = vxor.u32 %v1609, 2147483648
    %v1614 = vxor.u32 %v1610, 2147483648
    %v1615 = vmul.f32 %v1612, 1.442695
    %v1616 = vpow.pop %v1615
    %v1617 = vmul.f32 %v1613, 1.442695
    %v1618 = vpow.pop %v1617
    %v1619 = vmul.f32 %v1614, 1.442695
    %v1620 = vpow.pop %v1619
    %v1621 = vadd.f32 %v1616, 1.0
    %v1622 = vadd.f32 %v1618, 1.0
    %v1623 = vadd.f32 %v1620, 1.0
    %v1624 = vrcp.pop %v1621
    %v1625 = vmul.f32 %v1621, %v1624
    %v1626 = vsub.f32 1.0, %v1625
    %v1627 = vmul.f32 %v1624, %v1626
    %v1628 = vadd.f32 %v1624, %v1627
    %vm1629 = vweird.f32 %v1621
    %vm1630 = vweird.f32 %v1624
    %vm1631 = vmor %vm1629, %vm1630
    %v1632 = vsel %vm1631, %v1624, %v1628
    %v1633 = vand.u32 2147483647, %v1621
    %vm1634 = vcmp.eq.f32.partialorder %v1633, 8.507059e+37
    %v1635 = vand.u32 %v1621, 2147483648
    %v1636 = vor.u32 1.1754944e-38, %v1635
    %v1637 = vsel %vm1634, %v1636, %v1632
    %v1638 = vmul.f32 1.0, %v1637
    %v1639 = vrcp.pop %v1622
    %v1640 = vmul.f32 %v1622, %v1639
    %v1641 = vsub.f32 1.0, %v1640
    %v1642 = vmul.f32 %v1639, %v1641
    %v1643 = vadd.f32 %v1639, %v1642
    %vm1644 = vweird.f32 %v1622
    %vm1645 = vweird.f32 %v1639
    %vm1646 = vmor %vm1644, %vm1645
    %v1647 = vsel %vm1646, %v1639, %v1643
    %v1648 = vand.u32 2147483647, %v1622
    %vm1649 = vcmp.eq.f32.partialorder %v1648, 8.507059e+37
    %v1650 = vand.u32 %v1622, 2147483648
    %v1651 = vor.u32 1.1754944e-38, %v1650
    %v1652 = vsel %vm1649, %v1651, %v1647
    %v1653 = vmul.f32 1.0, %v1652
    %v1654 = vrcp.pop %v1623
    %v1655 = vmul.f32 %v1623, %v1654
    %v1656 = vsub.f32 1.0, %v1655
    %v1657 = vmul.f32 %v1654, %v1656
    %v1658 = vadd.f32 %v1654, %v1657
    %vm1659 = vweird.f32 %v1623
    %vm1660 = vweird.f32 %v1654
    %vm1661 = vmor %vm1659, %vm1660
    %v1662 = vsel %vm1661, %v1654, %v1658
    %v1663 = vand.u32 2147483647, %v1623
    %vm1664 = vcmp.eq.f32.partialorder %v1663, 8.507059e+37
    %v1665 = vand.u32 %v1623, 2147483648
    %v1666 = vor.u32 1.1754944e-38, %v1665
    %v1667 = vsel %vm1664, %v1666, %v1662
    %v1668 = vmul.f32 1.0, %v1667
    %v1669 = vtanh.pop %v1611
    %v1671 = vrot.slane %v1537, 6
    %v1673 = vmul.f32 %v1653, %v1671
    %v1674 = vmul.f32 %v1638, %v1669
    %v1675 = vadd.f32 %v1673, %v1674
    %v1676 = vtanh.pop %v1675
    %v1677 = vmul.f32 %v1668, %v1676
    %v1679 = vrot.slane %v330, 2
    %v1681 = vpack.c.bf16 %v1677, %v1677
    %v1682 = vpack.c.bf16 %v1679, %v1679
    %v1683 = vld [vmem:[#allocation11] sm:$0xf]
    %v1684 = vld [vmem:[#allocation11 + $0x4] sm:$0xf]
    %v1685 = vld [vmem:[#allocation11 + $0x8] sm:$0xf]
    %v1686 = vld [vmem:[#allocation11 + $0xc] sm:$0xf]
    %v1687 = vld [vmem:[#allocation11 + $0x10] sm:$0xf]
    %v1688 = vld [vmem:[#allocation11 + $0x14] sm:$0xf]
    %v1689 = vld [vmem:[#allocation11 + $0x18] sm:$0xf]
    %v1690 = vld [vmem:[#allocation11 + $0x1c] sm:$0xf]
    %v1691 = vld [vmem:[#allocation11 + $0x20] sm:$0xf]
    %v1692 = vld [vmem:[#allocation11 + $0x24] sm:$0xf]
    %v1693 = vld [vmem:[#allocation11 + $0x28] sm:$0xf]
    %v1694 = vld [vmem:[#allocation11 + $0x2c] sm:$0xf]
    %v1695 = vld [vmem:[#allocation11 + $0x30] sm:$0xf]
    %v1696 = vld [vmem:[#allocation11 + $0x34] sm:$0xf]
    %v1697 = vld [vmem:[#allocation11 + $0x38] sm:$0xf]
    %v1698 = vld [vmem:[#allocation11 + $0x3c] sm:$0xf]
    %v1699 = vld [vmem:[#allocation11 + $0x40] sm:$0xf]
    %v1700 = vld [vmem:[#allocation11 + $0x44] sm:$0xf]
    %v1701 = vld [vmem:[#allocation11 + $0x48] sm:$0xf]
    %v1702 = vld [vmem:[#allocation11 + $0x4c] sm:$0xf]
    %v1703 = vld [vmem:[#allocation11 + $0x50] sm:$0xf]
    %v1704 = vld [vmem:[#allocation11 + $0x54] sm:$0xf]
    %v1705 = vld [vmem:[#allocation11 + $0x58] sm:$0xf]
    %v1706 = vld [vmem:[#allocation11 + $0x5c] sm:$0xf]
    %v1707 = vld [vmem:[#allocation11 + $0x60] sm:$0xf]
    %v1708 = vld [vmem:[#allocation11 + $0x64] sm:$0xf]
    %v1709 = vld [vmem:[#allocation11 + $0x68] sm:$0xf]
    %v1710 = vld [vmem:[#allocation11 + $0x6c] sm:$0xf]
    %v1711 = vld [vmem:[#allocation11 + $0x70] sm:$0xf]
    %v1712 = vld [vmem:[#allocation11 + $0x74] sm:$0xf]
    %v1713 = vld [vmem:[#allocation11 + $0x78] sm:$0xf]
    %v1714 = vld [vmem:[#allocation11 + $0x7c] sm:$0xf]
    %v1715 = vld [vmem:[%s7] sm:$0x1]
    %v1717 = vperm.slane %v1715, 0
    %v1721 = vrot.slane %v1681, 3
    %v1722 = vrot.slane %v1682, 3
    %v1757 = vunpack.c.l.b16 %v1683
    %v1758 = vunpack.c.l.b16 %v1684
    %v1759 = vunpack.c.l.b16 %v1685
    %v1760 = vunpack.c.l.b16 %v1686
    %v1761 = vunpack.c.l.b16 %v1687
    %v1762 = vunpack.c.l.b16 %v1688
    %v1763 = vunpack.c.l.b16 %v1689
    %v1764 = vunpack.c.l.b16 %v1690
    %v1765 = vunpack.c.l.b16 %v1691
    %v1766 = vunpack.c.l.b16 %v1692
    %v1767 = vunpack.c.l.b16 %v1693
    %v1768 = vunpack.c.l.b16 %v1694
    %v1769 = vunpack.c.l.b16 %v1695
    %v1770 = vunpack.c.l.b16 %v1696
    %v1771 = vunpack.c.l.b16 %v1697
    %v1772 = vunpack.c.l.b16 %v1698
    %v1773 = vunpack.c.l.b16 %v1699
    %v1774 = vunpack.c.l.b16 %v1700
    %v1775 = vunpack.c.l.b16 %v1701
    %v1776 = vunpack.c.l.b16 %v1702
    %v1777 = vunpack.c.l.b16 %v1703
    %v1778 = vunpack.c.l.b16 %v1704
    %v1779 = vunpack.c.l.b16 %v1705
    %v1780 = vunpack.c.l.b16 %v1706
    %v1781 = vunpack.c.l.b16 %v1707
    %v1782 = vunpack.c.l.b16 %v1708
    %v1783 = vunpack.c.l.b16 %v1709
    %v1784 = vunpack.c.l.b16 %v1710
    %v1785 = vunpack.c.l.b16 %v1711
    %v1786 = vunpack.c.l.b16 %v1712
    %v1787 = vunpack.c.l.b16 %v1713
    %v1788 = vunpack.c.l.b16 %v1714
    %v1789 = vpack.c.b16 %v1758, %v1757
    %v1790 = vpack.c.b16 %v1760, %v1759
    %v1791 = vpack.c.b16 %v1762, %v1761
    %v1792 = vpack.c.b16 %v1764, %v1763
    %v1793 = vpack.c.b16 %v1766, %v1765
    %v1794 = vpack.c.b16 %v1768, %v1767
    %v1795 = vpack.c.b16 %v1770, %v1769
    %v1796 = vpack.c.b16 %v1772, %v1771
    %v1797 = vpack.c.b16 %v1774, %v1773
    %v1798 = vpack.c.b16 %v1776, %v1775
    %v1799 = vpack.c.b16 %v1778, %v1777
    %v1800 = vpack.c.b16 %v1780, %v1779
    %v1801 = vpack.c.b16 %v1782, %v1781
    %v1802 = vpack.c.b16 %v1784, %v1783
    %v1803 = vpack.c.b16 %v1786, %v1785
    %v1804 = vpack.c.b16 %v1788, %v1787
    %1821 = vmatpush.bf16.msra.mxu0 %v1796
    %1822 = vmatpush.bf16.msra.mxu0 %v1795
    %1823 = vmatpush.bf16.msra.mxu0 %v1794
    %1824 = vmatpush.bf16.msra.mxu0 %v1793
    %1825 = vmatpush.bf16.msra.mxu0 %v1792
    %1826 = vmatpush.bf16.msra.mxu0 %v1791
    %1827 = vmatpush.bf16.msra.mxu0 %v1790
    %1828 = vmatpush.bf16.msra.mxu0 %v1789
    %1829 = vmatmul.bf16.gmra.mxu0 %v1721
    %v1830 = vpop.f32.mrf.mxu0
    %v1831 = vadd.f32 %v1717, %v1830
    %v1832 = vpop.f32.mrf.mxu0
    %1833 = vdwg.mxu0
    %1834 = vmatpush.bf16.msra.mxu0 %v1804
    %1835 = vmatpush.bf16.msra.mxu0 %v1803
    %1836 = vmatpush.bf16.msra.mxu0 %v1802
    %1837 = vmatpush.bf16.msra.mxu0 %v1801
    %1838 = vmatpush.bf16.msra.mxu0 %v1800
    %1839 = vmatpush.bf16.msra.mxu0 %v1799
    %1840 = vmatpush.bf16.msra.mxu0 %v1798
    %1841 = vmatpush.bf16.msra.mxu0 %v1797
    %1842 = vmatmul.bf16.gmra.mxu0 %v1722
    %v1843 = vpop.f32.mrf.mxu0
    %v1844 = vadd.f32 %v1831, %v1843
    %v1845 = vpop.f32.mrf.mxu0
    %1846 = vdwg.mxu0
    %1847 = vst [vmem:[#allocation13] sm:$0x3] %v1844
    // Predicated region
    $region58: #{tpu_custom_call.1} parent=1 // pred_check
      _
    $region59: #{tpu_custom_call.1} parent=1 // pred_check_branch
      %1849 = sbr.rel (0) target = $region61
    $region60: #{tpu_custom_call.1} parent=1 // pred_region
      %1851 = vsyncadd [#allocation4], 0
      %s1853 = sshll.u32 [#allocation13], 4
      %s1854 = int_to_ptr.vmem [resolvable:$true] %s1853
      %s1855 = sshll.u32 %s8, 4
      %s1856 = int_to_ptr.hbm [resolvable:$true] %s1855
      %1858 = dma.vmem_to_hbm [thread:$0]  %s1854, 32, %s1856, [#allocation4]
    $region61: #{tpu_custom_call.1} parent=1 // pred_fallthru
      _
    // Predicated region
    $region62: #{tpu_custom_call.1} parent=1 // pred_check
      _
    $region63: #{tpu_custom_call.1} parent=1 // pred_check_branch
      %1860 = sbr.rel (0) target = $region65
    $region64: #{tpu_custom_call.1} parent=1 // pred_region
      %1862 = dma.done [#allocation4], 32
    $region65: #{tpu_custom_call.1} parent=1 // pred_fallthru
      _
    %1863 = vsyncpa [#allocation3], 1
    %1864 = vsyncpa [#allocation6], 1
    %1865 = vsyncpa [#allocation9], 1
    %1866 = vsyncpa [#allocation12], 1
    %1867 = vsyncpa [#allocation4], 1

</llo_original>
